<compile_context>
chip_gen: v5e
topology: v5e:2x2
jax: 0.10.0
libtpu: 0.0.40
codegen_flags: <defaults>
</compile_context>

<pallas_src>
import jax
import jax.numpy as jnp
from jax import lax
from jax.experimental import pallas as pl
from jax.experimental.pallas import tpu as pltpu


def _scale_filters(filters, multiplier=1.0, base=8):
    """Same channel-rounding rule as the PyTorch module."""
    round_half_up = int(int(filters) * multiplier / base + 0.5)
    result = int(round_half_up * base)
    return max(result, base)


def _round_up(x, m):
    return (x + m - 1) // m * m


# ----------------------------- Pallas kernel ------------------------------ #
def _make_fused_conv_kernel(wp):
    """wp = padded row stride (W + 2); tap (kh, kw) is a lane shift kh*wp+kw."""

    def kernel(xp_ref, w1_ref, b1_ref, w2_ref, b2_ref, o_ref):
        # xp_ref: (G, Cin, IMG_IN)   f32  zero-padded images, channels on
        #                                 sublanes, padded pixels on lanes
        # w1_ref: (9, Cexp, Cin)     bf16 3x3 taps with BN1 scale folded in
        # b1_ref: (Cexp, 1)          f32  folded BN1 bias
        # w2_ref: (Cout, Cexp)       bf16 1x1 weights with BN2 scale folded in
        # b2_ref: (Cout, 1)          f32  folded BN2 bias
        # o_ref:  (G, Cout, IMG_OUT) f32  lane-dense output (padded-grid coords)
        g, _, img_out = o_ref.shape
        cexp = w1_ref.shape[1]

        for i in range(g):                       # static unroll over images
            xi_f32 = xp_ref[i]                   # (Cin, IMG_IN) f32 (one load)
            xi = xi_f32.astype(jnp.bfloat16)

            # 3x3 conv = nine lane-shifted (Cexp,Cin)@(Cin,IMG_OUT) MXU matmuls
            acc = jnp.zeros((cexp, img_out), jnp.float32)
            for kh in range(3):
                for kw in range(3):
                    off = kh * wp + kw
                    tap = xi[:, off:off + img_out]           # (Cin, IMG_OUT)
                    acc = acc + jnp.dot(w1_ref[kh * 3 + kw], tap,
                                        preferred_element_type=jnp.float32)

            # folded BN1 bias + ReLU (f32 epilogue), bf16 for the 1x1 MXU pass
            y = jnp.maximum(acc + b1_ref[...], 0.0).astype(jnp.bfloat16)

            # 1x1 conv: (Cout,Cexp)@(Cexp,IMG_OUT), BN2 scale folded into w2
            z = jnp.dot(w2_ref[...], y, preferred_element_type=jnp.float32)

            # residual (stride==1, Cin==Cout): the f32 centre tap IS x, exactly
            resid = xi_f32[:, wp + 1:wp + 1 + img_out]

            o_ref[i] = (z + b2_ref[...] + resid).astype(o_ref.dtype)

    return kernel


# ------------------------------ JAX wrapper ------------------------------- #
def _fold_bn(gamma, beta, mean, var, eps):
    scale = gamma / jnp.sqrt(var + eps)
    bias = beta - mean * scale
    return scale.astype(jnp.float32), bias.astype(jnp.float32)


def _images_per_block(n_imgs, lanes_per_img, target_lanes=2048):
    """Group images per grid step: big lane tiles, but keep >= 2 grid steps on
    v7x (2 TensorCores/chip); single-TC chips (v5e/v6e) prefer one big step."""
    try:
        kind = jax.devices()[0].device_kind.lower()
        min_steps = 2 if "v7" in kind else 1
    except Exception:                       # conservative fallback
        min_steps = 2
    g = max(1, min(n_imgs, target_lanes // max(lanes_per_img, 1)))
    while g > 1 and (n_imgs % g != 0 or n_imgs // g < min_steps):
        g -= 1
    return g


def fused_conv_forward(x_nchw, w1_oihw, bn1, w2_oihw, bn2):
    """FusedConv forward. x_nchw: (N, Cin, H, W) f32 -> (N, Cout, H, W) f32."""
    N, Cin, H, W = x_nchw.shape
    Cexp = w1_oihw.shape[0]
    Cout = w2_oihw.shape[0]
    assert Cin == Cout, "residual path requires Cin == Cout (this cnf)"

    Hp, Wp = H + 2, W + 2
    HWp = Hp * Wp
    IMG_OUT = _round_up(HWp, 128)             # lane-dense output span / image
    max_off = 2 * Wp + 2                      # largest tap lane shift
    IMG_IN = IMG_OUT + _round_up(max_off, 128)  # slack so taps stay in-bounds

    s1, b1 = _fold_bn(*bn1)
    s2, b2 = _fold_bn(*bn2)

    # Fold BN scales into bf16 conv weights (the MXU applies them for free).
    # w1: OIHW -> (kh, kw, Cexp, Cin) -> (9, Cexp, Cin)
    w1f = (jnp.transpose(w1_oihw, (2, 3, 0, 1)) * s1[None, None, :, None]
           ).reshape(9, Cexp, Cin).astype(jnp.bfloat16)
    w2f = (w2_oihw[:, :, 0, 0] * s2[:, None]).astype(jnp.bfloat16)
    b1c = b1.reshape(Cexp, 1)
    b2c = b2.reshape(Cout, 1)

    # Only wrapper-side prep: zero-pad spatially, flatten each image's padded
    # grid onto the lane axis (f32, ~1.3x the size of x -- no 9x im2col, and
    # no relayout of any expanded tensor).
    xp = jnp.pad(x_nchw, ((0, 0), (0, 0), (1, 1), (1, 1)))      # (N,Cin,Hp,Wp)
    xp = xp.reshape(N, Cin, HWp)
    xp = jnp.pad(xp, ((0, 0), (0, 0), (0, IMG_IN - HWp)))       # (N,Cin,IMG_IN)
    xp = xp.astype(jnp.float32)

    G = _images_per_block(N, IMG_OUT)
    grid = (N // G,)

    flops = 2 * N * IMG_OUT * (9 * Cin * Cexp + Cexp * Cout)
    bytes_accessed = (xp.size * 4 + N * Cout * IMG_OUT * 4
                      + w1f.size * 2 + w2f.size * 2
                      + (b1c.size + b2c.size) * 4)

    out_padded = pl.pallas_call(
        _make_fused_conv_kernel(Wp),
        out_shape=jax.ShapeDtypeStruct((N, Cout, IMG_OUT), jnp.float32),
        grid_spec=pltpu.PrefetchScalarGridSpec(
            num_scalar_prefetch=0,
            grid=grid,
            in_specs=[
                pl.BlockSpec((G, Cin, IMG_IN), lambda i: (i, 0, 0)),
                pl.BlockSpec((9, Cexp, Cin), lambda i: (0, 0, 0)),
                pl.BlockSpec((Cexp, 1), lambda i: (0, 0)),
                pl.BlockSpec((Cout, Cexp), lambda i: (0, 0)),
                pl.BlockSpec((Cout, 1), lambda i: (0, 0)),
            ],
            out_specs=pl.BlockSpec((G, Cout, IMG_OUT), lambda i: (i, 0, 0)),
        ),
        compiler_params=pltpu.CompilerParams(
            dimension_semantics=("parallel",)),
        cost_estimate=pl.CostEstimate(
            flops=flops, transcendentals=0, bytes_accessed=bytes_accessed),
    )(xp, w1f, b1c, w2f, b2c)

    # Crop the valid (H, W) window; layout is already NCHW -> no transpose.
    out = out_padded[:, :, :HWp].reshape(N, Cout, Hp, Wp)[:, :, :H, :W]
    return out


# --------------------------- pure-JAX reference ---------------------------- #
def _bn_nchw(x, bn):
    gamma, beta, mean, var, eps = bn
    inv = 1.0 / jnp.sqrt(var + eps)
    return ((x - mean[None, :, None, None]) * inv[None, :, None, None]
            * gamma[None, :, None, None] + beta[None, :, None, None])


def fused_conv_reference(x_nchw, w1_oihw, bn1, w2_oihw, bn2):
    y = lax.conv_general_dilated(x_nchw, w1_oihw, (1, 1), ((1, 1), (1, 1)),
                                 dimension_numbers=('NCHW', 'OIHW', 'NCHW'))
    y = jax.nn.relu(_bn_nchw(y, bn1))
    z = lax.conv_general_dilated(y, w2_oihw, (1, 1), ((0, 0), (0, 0)),
                                 dimension_numbers=('NCHW', 'OIHW', 'NCHW'))
    z = _bn_nchw(z, bn2)
    return z + x_nchw                                      # use_res_connect


# ---------------------------------- main ----------------------------------- #
if __name__ == "__main__":
    # cnf: input_channels=16, kernel=3, e_ratio=2.0, out_channels=16, stride=1
    #      use_se=False, activation='RE'  -> residual connection active.
    N, Cin, H, W = 2, 16, 16, 16
    Cout = 16
    Cexp = _scale_filters(Cout, 2.0, 8)    # expanded_channels = 32
    eps = 1e-5

    key = jax.random.PRNGKey(0)
    ks = jax.random.split(key, 12)

    x = jax.random.normal(ks[0], (N, Cin, H, W), jnp.float32)

    # Conv weights (PyTorch OIHW), no bias.
    w1 = jax.random.normal(ks[1], (Cexp, Cin, 3, 3), jnp.float32) * 0.1
    w2 = jax.random.normal(ks[2], (Cout, Cexp, 1, 1), jnp.float32) * 0.1

    # BatchNorm (eval mode): gamma, beta, running_mean, running_var, eps.
    bn1 = (jax.random.uniform(ks[3], (Cexp,), jnp.float32, 0.5, 1.5),
           jax.random.normal(ks[4], (Cexp,), jnp.float32) * 0.1,
           jax.random.normal(ks[5], (Cexp,), jnp.float32) * 0.1,
           jax.random.uniform(ks[6], (Cexp,), jnp.float32, 0.5, 1.5),
           eps)
    bn2 = (jax.random.uniform(ks[7], (Cout,), jnp.float32, 0.5, 1.5),
           jax.random.normal(ks[8], (Cout,), jnp.float32) * 0.1,
           jax.random.normal(ks[9], (Cout,), jnp.float32) * 0.1,
           jax.random.uniform(ks[10], (Cout,), jnp.float32, 0.5, 1.5),
           eps)

    out = fused_conv_forward(x, w1, bn1, w2, bn2)
    out = jax.block_until_ready(out)

    ref = fused_conv_reference(x, w1, bn1, w2, bn2)
    ref = jax.block_until_ready(ref)

    assert out.shape == (N, Cout, H, W)
    # Tolerance for bf16 MXU operands (f32 accumulation, f32 residual/epilogue).
    max_err = float(jnp.max(jnp.abs(out - ref)))
    assert jnp.allclose(out, ref, rtol=2e-2, atol=5e-2), (
        f"max abs err {max_err}")

    print("KERNEL_OK")
</pallas_src>

<mosaic_0001>
module attributes {stable_mosaic.version = 11 : i64} {
  func.func @kernel(%arg0: i32, %arg1: memref<2x16x512xf32, #tpu.memory_space<vmem>>, %arg2: memref<9x32x16xbf16, #tpu.memory_space<vmem>>, %arg3: memref<32x1xf32, #tpu.memory_space<vmem>>, %arg4: memref<16x32xbf16, #tpu.memory_space<vmem>>, %arg5: memref<16x1xf32, #tpu.memory_space<vmem>>, %arg6: memref<2x16x384xf32, #tpu.memory_space<vmem>>) attributes {dimension_semantics = [#tpu.dimension_semantics<parallel>], iteration_bounds = array<i64: 1>, scalar_prefetch = 0 : i64, scratch_operands = 0 : i64, tpu.core_type = #tpu.core_type<tc>, window_params = [{transform_indices = @transform_0, window_bounds = array<i64: 2, 16, 512>}, {pipeline_mode = #tpu.pipeline_mode<synchronous>, transform_indices = @transform_1, window_bounds = array<i64: 9, 32, 16>}, {pipeline_mode = #tpu.pipeline_mode<synchronous>, transform_indices = @transform_2, window_bounds = array<i64: 32, 1>}, {pipeline_mode = #tpu.pipeline_mode<synchronous>, transform_indices = @transform_3, window_bounds = array<i64: 16, 32>}, {pipeline_mode = #tpu.pipeline_mode<synchronous>, transform_indices = @transform_4, window_bounds = array<i64: 16, 1>}, {transform_indices = @transform_5, window_bounds = array<i64: 2, 16, 384>}]} {
    %c0 = arith.constant 0 : index
    %c0_0 = arith.constant 0 : index
    %c0_1 = arith.constant 0 : index
    %0 = vector.load %arg1[%c0, %c0_0, %c0_1] : memref<2x16x512xf32, #tpu.memory_space<vmem>>, vector<1x16x512xf32>
    %1 = vector.shape_cast %0 : vector<1x16x512xf32> to vector<16x512xf32>
    %2 = arith.truncf %1 : vector<16x512xf32> to vector<16x512xbf16>
    %cst = arith.constant 0.000000e+00 : f32
    %3 = vector.broadcast %cst : f32 to vector<32x384xf32>
    %4 = vector.extract_strided_slice %2 {offsets = [0, 0], sizes = [16, 384], strides = [1, 1]} : vector<16x512xbf16> to vector<16x384xbf16>
    %c0_2 = arith.constant 0 : index
    %c0_3 = arith.constant 0 : index
    %c0_4 = arith.constant 0 : index
    %5 = vector.load %arg2[%c0_2, %c0_3, %c0_4] : memref<9x32x16xbf16, #tpu.memory_space<vmem>>, vector<1x32x16xbf16>
    %6 = vector.shape_cast %5 : vector<1x32x16xbf16> to vector<32x16xbf16>
    %cst_5 = arith.constant dense<0.000000e+00> : vector<32x384xf32>
    %7 = tpu.matmul %6, %4, %cst_5 {dimension_numbers = #tpu.dot_dimension_numbers<[1], [0], [0], [1], [0, 0, 1, 1], [], []>} : vector<32x16xbf16>, vector<16x384xbf16>, vector<32x384xf32> -> vector<32x384xf32>
    %8 = arith.addf %3, %7 : vector<32x384xf32>
    %9 = vector.extract_strided_slice %2 {offsets = [0, 1], sizes = [16, 384], strides = [1, 1]} : vector<16x512xbf16> to vector<16x384xbf16>
    %c1 = arith.constant 1 : index
    %c0_6 = arith.constant 0 : index
    %c0_7 = arith.constant 0 : index
    %10 = vector.load %arg2[%c1, %c0_6, %c0_7] : memref<9x32x16xbf16, #tpu.memory_space<vmem>>, vector<1x32x16xbf16>
    %11 = vector.shape_cast %10 : vector<1x32x16xbf16> to vector<32x16xbf16>
    %cst_8 = arith.constant dense<0.000000e+00> : vector<32x384xf32>
    %12 = tpu.matmul %11, %9, %cst_8 {dimension_numbers = #tpu.dot_dimension_numbers<[1], [0], [0], [1], [0, 0, 1, 1], [], []>} : vector<32x16xbf16>, vector<16x384xbf16>, vector<32x384xf32> -> vector<32x384xf32>
    %13 = arith.addf %8, %12 : vector<32x384xf32>
    %14 = vector.extract_strided_slice %2 {offsets = [0, 2], sizes = [16, 384], strides = [1, 1]} : vector<16x512xbf16> to vector<16x384xbf16>
    %c2 = arith.constant 2 : index
    %c0_9 = arith.constant 0 : index
    %c0_10 = arith.constant 0 : index
    %15 = vector.load %arg2[%c2, %c0_9, %c0_10] : memref<9x32x16xbf16, #tpu.memory_space<vmem>>, vector<1x32x16xbf16>
    %16 = vector.shape_cast %15 : vector<1x32x16xbf16> to vector<32x16xbf16>
    %cst_11 = arith.constant dense<0.000000e+00> : vector<32x384xf32>
    %17 = tpu.matmul %16, %14, %cst_11 {dimension_numbers = #tpu.dot_dimension_numbers<[1], [0], [0], [1], [0, 0, 1, 1], [], []>} : vector<32x16xbf16>, vector<16x384xbf16>, vector<32x384xf32> -> vector<32x384xf32>
    %18 = arith.addf %13, %17 : vector<32x384xf32>
    %19 = vector.extract_strided_slice %2 {offsets = [0, 18], sizes = [16, 384], strides = [1, 1]} : vector<16x512xbf16> to vector<16x384xbf16>
    %c3 = arith.constant 3 : index
    %c0_12 = arith.constant 0 : index
    %c0_13 = arith.constant 0 : index
    %20 = vector.load %arg2[%c3, %c0_12, %c0_13] : memref<9x32x16xbf16, #tpu.memory_space<vmem>>, vector<1x32x16xbf16>
    %21 = vector.shape_cast %20 : vector<1x32x16xbf16> to vector<32x16xbf16>
    %cst_14 = arith.constant dense<0.000000e+00> : vector<32x384xf32>
    %22 = tpu.matmul %21, %19, %cst_14 {dimension_numbers = #tpu.dot_dimension_numbers<[1], [0], [0], [1], [0, 0, 1, 1], [], []>} : vector<32x16xbf16>, vector<16x384xbf16>, vector<32x384xf32> -> vector<32x384xf32>
    %23 = arith.addf %18, %22 : vector<32x384xf32>
    %24 = vector.extract_strided_slice %2 {offsets = [0, 19], sizes = [16, 384], strides = [1, 1]} : vector<16x512xbf16> to vector<16x384xbf16>
    %c4 = arith.constant 4 : index
    %c0_15 = arith.constant 0 : index
    %c0_16 = arith.constant 0 : index
    %25 = vector.load %arg2[%c4, %c0_15, %c0_16] : memref<9x32x16xbf16, #tpu.memory_space<vmem>>, vector<1x32x16xbf16>
    %26 = vector.shape_cast %25 : vector<1x32x16xbf16> to vector<32x16xbf16>
    %cst_17 = arith.constant dense<0.000000e+00> : vector<32x384xf32>
    %27 = tpu.matmul %26, %24, %cst_17 {dimension_numbers = #tpu.dot_dimension_numbers<[1], [0], [0], [1], [0, 0, 1, 1], [], []>} : vector<32x16xbf16>, vector<16x384xbf16>, vector<32x384xf32> -> vector<32x384xf32>
    %28 = arith.addf %23, %27 : vector<32x384xf32>
    %29 = vector.extract_strided_slice %2 {offsets = [0, 20], sizes = [16, 384], strides = [1, 1]} : vector<16x512xbf16> to vector<16x384xbf16>
    %c5 = arith.constant 5 : index
    %c0_18 = arith.constant 0 : index
    %c0_19 = arith.constant 0 : index
    %30 = vector.load %arg2[%c5, %c0_18, %c0_19] : memref<9x32x16xbf16, #tpu.memory_space<vmem>>, vector<1x32x16xbf16>
    %31 = vector.shape_cast %30 : vector<1x32x16xbf16> to vector<32x16xbf16>
    %cst_20 = arith.constant dense<0.000000e+00> : vector<32x384xf32>
    %32 = tpu.matmul %31, %29, %cst_20 {dimension_numbers = #tpu.dot_dimension_numbers<[1], [0], [0], [1], [0, 0, 1, 1], [], []>} : vector<32x16xbf16>, vector<16x384xbf16>, vector<32x384xf32> -> vector<32x384xf32>
    %33 = arith.addf %28, %32 : vector<32x384xf32>
    %34 = vector.extract_strided_slice %2 {offsets = [0, 36], sizes = [16, 384], strides = [1, 1]} : vector<16x512xbf16> to vector<16x384xbf16>
    %c6 = arith.constant 6 : index
    %c0_21 = arith.constant 0 : index
    %c0_22 = arith.constant 0 : index
    %35 = vector.load %arg2[%c6, %c0_21, %c0_22] : memref<9x32x16xbf16, #tpu.memory_space<vmem>>, vector<1x32x16xbf16>
    %36 = vector.shape_cast %35 : vector<1x32x16xbf16> to vector<32x16xbf16>
    %cst_23 = arith.constant dense<0.000000e+00> : vector<32x384xf32>
    %37 = tpu.matmul %36, %34, %cst_23 {dimension_numbers = #tpu.dot_dimension_numbers<[1], [0], [0], [1], [0, 0, 1, 1], [], []>} : vector<32x16xbf16>, vector<16x384xbf16>, vector<32x384xf32> -> vector<32x384xf32>
    %38 = arith.addf %33, %37 : vector<32x384xf32>
    %39 = vector.extract_strided_slice %2 {offsets = [0, 37], sizes = [16, 384], strides = [1, 1]} : vector<16x512xbf16> to vector<16x384xbf16>
    %c7 = arith.constant 7 : index
    %c0_24 = arith.constant 0 : index
    %c0_25 = arith.constant 0 : index
    %40 = vector.load %arg2[%c7, %c0_24, %c0_25] : memref<9x32x16xbf16, #tpu.memory_space<vmem>>, vector<1x32x16xbf16>
    %41 = vector.shape_cast %40 : vector<1x32x16xbf16> to vector<32x16xbf16>
    %cst_26 = arith.constant dense<0.000000e+00> : vector<32x384xf32>
    %42 = tpu.matmul %41, %39, %cst_26 {dimension_numbers = #tpu.dot_dimension_numbers<[1], [0], [0], [1], [0, 0, 1, 1], [], []>} : vector<32x16xbf16>, vector<16x384xbf16>, vector<32x384xf32> -> vector<32x384xf32>
    %43 = arith.addf %38, %42 : vector<32x384xf32>
    %44 = vector.extract_strided_slice %2 {offsets = [0, 38], sizes = [16, 384], strides = [1, 1]} : vector<16x512xbf16> to vector<16x384xbf16>
    %c8 = arith.constant 8 : index
    %c0_27 = arith.constant 0 : index
    %c0_28 = arith.constant 0 : index
    %45 = vector.load %arg2[%c8, %c0_27, %c0_28] : memref<9x32x16xbf16, #tpu.memory_space<vmem>>, vector<1x32x16xbf16>
    %46 = vector.shape_cast %45 : vector<1x32x16xbf16> to vector<32x16xbf16>
    %cst_29 = arith.constant dense<0.000000e+00> : vector<32x384xf32>
    %47 = tpu.matmul %46, %44, %cst_29 {dimension_numbers = #tpu.dot_dimension_numbers<[1], [0], [0], [1], [0, 0, 1, 1], [], []>} : vector<32x16xbf16>, vector<16x384xbf16>, vector<32x384xf32> -> vector<32x384xf32>
    %48 = arith.addf %43, %47 : vector<32x384xf32>
    %c0_30 = arith.constant 0 : index
    %c0_31 = arith.constant 0 : index
    %49 = vector.load %arg3[%c0_30, %c0_31] : memref<32x1xf32, #tpu.memory_space<vmem>>, vector<32x1xf32>
    %50 = vector.broadcast %49 : vector<32x1xf32> to vector<32x384xf32>
    %51 = arith.addf %48, %50 : vector<32x384xf32>
    %cst_32 = arith.constant 0.000000e+00 : f32
    %52 = vector.broadcast %cst_32 : f32 to vector<32x384xf32>
    %53 = arith.maximumf %51, %52 : vector<32x384xf32>
    %54 = arith.truncf %53 : vector<32x384xf32> to vector<32x384xbf16>
    %c0_33 = arith.constant 0 : index
    %c0_34 = arith.constant 0 : index
    %55 = vector.load %arg4[%c0_33, %c0_34] : memref<16x32xbf16, #tpu.memory_space<vmem>>, vector<16x32xbf16>
    %cst_35 = arith.constant dense<0.000000e+00> : vector<16x384xf32>
    %56 = tpu.matmul %55, %54, %cst_35 {dimension_numbers = #tpu.dot_dimension_numbers<[1], [0], [0], [1], [0, 0, 1, 1], [], []>} : vector<16x32xbf16>, vector<32x384xbf16>, vector<16x384xf32> -> vector<16x384xf32>
    %57 = vector.extract_strided_slice %1 {offsets = [0, 19], sizes = [16, 384], strides = [1, 1]} : vector<16x512xf32> to vector<16x384xf32>
    %c0_36 = arith.constant 0 : index
    %c0_37 = arith.constant 0 : index
    %58 = vector.load %arg5[%c0_36, %c0_37] : memref<16x1xf32, #tpu.memory_space<vmem>>, vector<16x1xf32>
    %59 = vector.broadcast %58 : vector<16x1xf32> to vector<16x384xf32>
    %60 = arith.addf %56, %59 : vector<16x384xf32>
    %61 = arith.addf %60, %57 : vector<16x384xf32>
    %c0_38 = arith.constant 0 : index
    %c0_39 = arith.constant 0 : index
    %c0_40 = arith.constant 0 : index
    %62 = vector.load %arg6[%c0_38, %c0_39, %c0_40] : memref<2x16x384xf32, #tpu.memory_space<vmem>>, vector<1x16x384xf32>
    %63 = vector.shape_cast %62 : vector<1x16x384xf32> to vector<16x384xf32>
    %64 = vector.shape_cast %61 : vector<16x384xf32> to vector<1x16x384xf32>
    tpu.vector_store %arg6[%c0_38, %c0_39, %c0_40], %64 {strides = array<i32>} : memref<2x16x384xf32, #tpu.memory_space<vmem>>, vector<1x16x384xf32>,
    %c1_41 = arith.constant 1 : index
    %c0_42 = arith.constant 0 : index
    %c0_43 = arith.constant 0 : index
    %65 = vector.load %arg1[%c1_41, %c0_42, %c0_43] : memref<2x16x512xf32, #tpu.memory_space<vmem>>, vector<1x16x512xf32>
    %66 = vector.shape_cast %65 : vector<1x16x512xf32> to vector<16x512xf32>
    %67 = arith.truncf %66 : vector<16x512xf32> to vector<16x512xbf16>
    %cst_44 = arith.constant 0.000000e+00 : f32
    %68 = vector.broadcast %cst_44 : f32 to vector<32x384xf32>
    %69 = vector.extract_strided_slice %67 {offsets = [0, 0], sizes = [16, 384], strides = [1, 1]} : vector<16x512xbf16> to vector<16x384xbf16>
    %c0_45 = arith.constant 0 : index
    %c0_46 = arith.constant 0 : index
    %c0_47 = arith.constant 0 : index
    %70 = vector.load %arg2[%c0_45, %c0_46, %c0_47] : memref<9x32x16xbf16, #tpu.memory_space<vmem>>, vector<1x32x16xbf16>
    %71 = vector.shape_cast %70 : vector<1x32x16xbf16> to vector<32x16xbf16>
    %cst_48 = arith.constant dense<0.000000e+00> : vector<32x384xf32>
    %72 = tpu.matmul %71, %69, %cst_48 {dimension_numbers = #tpu.dot_dimension_numbers<[1], [0], [0], [1], [0, 0, 1, 1], [], []>} : vector<32x16xbf16>, vector<16x384xbf16>, vector<32x384xf32> -> vector<32x384xf32>
    %73 = arith.addf %68, %72 : vector<32x384xf32>
    %74 = vector.extract_strided_slice %67 {offsets = [0, 1], sizes = [16, 384], strides = [1, 1]} : vector<16x512xbf16> to vector<16x384xbf16>
    %c1_49 = arith.constant 1 : index
    %c0_50 = arith.constant 0 : index
    %c0_51 = arith.constant 0 : index
    %75 = vector.load %arg2[%c1_49, %c0_50, %c0_51] : memref<9x32x16xbf16, #tpu.memory_space<vmem>>, vector<1x32x16xbf16>
    %76 = vector.shape_cast %75 : vector<1x32x16xbf16> to vector<32x16xbf16>
    %cst_52 = arith.constant dense<0.000000e+00> : vector<32x384xf32>
    %77 = tpu.matmul %76, %74, %cst_52 {dimension_numbers = #tpu.dot_dimension_numbers<[1], [0], [0], [1], [0, 0, 1, 1], [], []>} : vector<32x16xbf16>, vector<16x384xbf16>, vector<32x384xf32> -> vector<32x384xf32>
    %78 = arith.addf %73, %77 : vector<32x384xf32>
    %79 = vector.extract_strided_slice %67 {offsets = [0, 2], sizes = [16, 384], strides = [1, 1]} : vector<16x512xbf16> to vector<16x384xbf16>
    %c2_53 = arith.constant 2 : index
    %c0_54 = arith.constant 0 : index
    %c0_55 = arith.constant 0 : index
    %80 = vector.load %arg2[%c2_53, %c0_54, %c0_55] : memref<9x32x16xbf16, #tpu.memory_space<vmem>>, vector<1x32x16xbf16>
    %81 = vector.shape_cast %80 : vector<1x32x16xbf16> to vector<32x16xbf16>
    %cst_56 = arith.constant dense<0.000000e+00> : vector<32x384xf32>
    %82 = tpu.matmul %81, %79, %cst_56 {dimension_numbers = #tpu.dot_dimension_numbers<[1], [0], [0], [1], [0, 0, 1, 1], [], []>} : vector<32x16xbf16>, vector<16x384xbf16>, vector<32x384xf32> -> vector<32x384xf32>
    %83 = arith.addf %78, %82 : vector<32x384xf32>
    %84 = vector.extract_strided_slice %67 {offsets = [0, 18], sizes = [16, 384], strides = [1, 1]} : vector<16x512xbf16> to vector<16x384xbf16>
    %c3_57 = arith.constant 3 : index
    %c0_58 = arith.constant 0 : index
    %c0_59 = arith.constant 0 : index
    %85 = vector.load %arg2[%c3_57, %c0_58, %c0_59] : memref<9x32x16xbf16, #tpu.memory_space<vmem>>, vector<1x32x16xbf16>
    %86 = vector.shape_cast %85 : vector<1x32x16xbf16> to vector<32x16xbf16>
    %cst_60 = arith.constant dense<0.000000e+00> : vector<32x384xf32>
    %87 = tpu.matmul %86, %84, %cst_60 {dimension_numbers = #tpu.dot_dimension_numbers<[1], [0], [0], [1], [0, 0, 1, 1], [], []>} : vector<32x16xbf16>, vector<16x384xbf16>, vector<32x384xf32> -> vector<32x384xf32>
    %88 = arith.addf %83, %87 : vector<32x384xf32>
    %89 = vector.extract_strided_slice %67 {offsets = [0, 19], sizes = [16, 384], strides = [1, 1]} : vector<16x512xbf16> to vector<16x384xbf16>
    %c4_61 = arith.constant 4 : index
    %c0_62 = arith.constant 0 : index
    %c0_63 = arith.constant 0 : index
    %90 = vector.load %arg2[%c4_61, %c0_62, %c0_63] : memref<9x32x16xbf16, #tpu.memory_space<vmem>>, vector<1x32x16xbf16>
    %91 = vector.shape_cast %90 : vector<1x32x16xbf16> to vector<32x16xbf16>
    %cst_64 = arith.constant dense<0.000000e+00> : vector<32x384xf32>
    %92 = tpu.matmul %91, %89, %cst_64 {dimension_numbers = #tpu.dot_dimension_numbers<[1], [0], [0], [1], [0, 0, 1, 1], [], []>} : vector<32x16xbf16>, vector<16x384xbf16>, vector<32x384xf32> -> vector<32x384xf32>
    %93 = arith.addf %88, %92 : vector<32x384xf32>
    %94 = vector.extract_strided_slice %67 {offsets = [0, 20], sizes = [16, 384], strides = [1, 1]} : vector<16x512xbf16> to vector<16x384xbf16>
    %c5_65 = arith.constant 5 : index
    %c0_66 = arith.constant 0 : index
    %c0_67 = arith.constant 0 : index
    %95 = vector.load %arg2[%c5_65, %c0_66, %c0_67] : memref<9x32x16xbf16, #tpu.memory_space<vmem>>, vector<1x32x16xbf16>
    %96 = vector.shape_cast %95 : vector<1x32x16xbf16> to vector<32x16xbf16>
    %cst_68 = arith.constant dense<0.000000e+00> : vector<32x384xf32>
    %97 = tpu.matmul %96, %94, %cst_68 {dimension_numbers = #tpu.dot_dimension_numbers<[1], [0], [0], [1], [0, 0, 1, 1], [], []>} : vector<32x16xbf16>, vector<16x384xbf16>, vector<32x384xf32> -> vector<32x384xf32>
    %98 = arith.addf %93, %97 : vector<32x384xf32>
    %99 = vector.extract_strided_slice %67 {offsets = [0, 36], sizes = [16, 384], strides = [1, 1]} : vector<16x512xbf16> to vector<16x384xbf16>
    %c6_69 = arith.constant 6 : index
    %c0_70 = arith.constant 0 : index
    %c0_71 = arith.constant 0 : index
    %100 = vector.load %arg2[%c6_69, %c0_70, %c0_71] : memref<9x32x16xbf16, #tpu.memory_space<vmem>>, vector<1x32x16xbf16>
    %101 = vector.shape_cast %100 : vector<1x32x16xbf16> to vector<32x16xbf16>
    %cst_72 = arith.constant dense<0.000000e+00> : vector<32x384xf32>
    %102 = tpu.matmul %101, %99, %cst_72 {dimension_numbers = #tpu.dot_dimension_numbers<[1], [0], [0], [1], [0, 0, 1, 1], [], []>} : vector<32x16xbf16>, vector<16x384xbf16>, vector<32x384xf32> -> vector<32x384xf32>
    %103 = arith.addf %98, %102 : vector<32x384xf32>
    %104 = vector.extract_strided_slice %67 {offsets = [0, 37], sizes = [16, 384], strides = [1, 1]} : vector<16x512xbf16> to vector<16x384xbf16>
    %c7_73 = arith.constant 7 : index
    %c0_74 = arith.constant 0 : index
    %c0_75 = arith.constant 0 : index
    %105 = vector.load %arg2[%c7_73, %c0_74, %c0_75] : memref<9x32x16xbf16, #tpu.memory_space<vmem>>, vector<1x32x16xbf16>
    %106 = vector.shape_cast %105 : vector<1x32x16xbf16> to vector<32x16xbf16>
    %cst_76 = arith.constant dense<0.000000e+00> : vector<32x384xf32>
    %107 = tpu.matmul %106, %104, %cst_76 {dimension_numbers = #tpu.dot_dimension_numbers<[1], [0], [0], [1], [0, 0, 1, 1], [], []>} : vector<32x16xbf16>, vector<16x384xbf16>, vector<32x384xf32> -> vector<32x384xf32>
    %108 = arith.addf %103, %107 : vector<32x384xf32>
    %109 = vector.extract_strided_slice %67 {offsets = [0, 38], sizes = [16, 384], strides = [1, 1]} : vector<16x512xbf16> to vector<16x384xbf16>
    %c8_77 = arith.constant 8 : index
    %c0_78 = arith.constant 0 : index
    %c0_79 = arith.constant 0 : index
    %110 = vector.load %arg2[%c8_77, %c0_78, %c0_79] : memref<9x32x16xbf16, #tpu.memory_space<vmem>>, vector<1x32x16xbf16>
    %111 = vector.shape_cast %110 : vector<1x32x16xbf16> to vector<32x16xbf16>
    %cst_80 = arith.constant dense<0.000000e+00> : vector<32x384xf32>
    %112 = tpu.matmul %111, %109, %cst_80 {dimension_numbers = #tpu.dot_dimension_numbers<[1], [0], [0], [1], [0, 0, 1, 1], [], []>} : vector<32x16xbf16>, vector<16x384xbf16>, vector<32x384xf32> -> vector<32x384xf32>
    %113 = arith.addf %108, %112 : vector<32x384xf32>
    %c0_81 = arith.constant 0 : index
    %c0_82 = arith.constant 0 : index
    %114 = vector.load %arg3[%c0_81, %c0_82] : memref<32x1xf32, #tpu.memory_space<vmem>>, vector<32x1xf32>
    %115 = vector.broadcast %114 : vector<32x1xf32> to vector<32x384xf32>
    %116 = arith.addf %113, %115 : vector<32x384xf32>
    %cst_83 = arith.constant 0.000000e+00 : f32
    %117 = vector.broadcast %cst_83 : f32 to vector<32x384xf32>
    %118 = arith.maximumf %116, %117 : vector<32x384xf32>
    %119 = arith.truncf %118 : vector<32x384xf32> to vector<32x384xbf16>
    %c0_84 = arith.constant 0 : index
    %c0_85 = arith.constant 0 : index
    %120 = vector.load %arg4[%c0_84, %c0_85] : memref<16x32xbf16, #tpu.memory_space<vmem>>, vector<16x32xbf16>
    %cst_86 = arith.constant dense<0.000000e+00> : vector<16x384xf32>
    %121 = tpu.matmul %120, %119, %cst_86 {dimension_numbers = #tpu.dot_dimension_numbers<[1], [0], [0], [1], [0, 0, 1, 1], [], []>} : vector<16x32xbf16>, vector<32x384xbf16>, vector<16x384xf32> -> vector<16x384xf32>
    %122 = vector.extract_strided_slice %66 {offsets = [0, 19], sizes = [16, 384], strides = [1, 1]} : vector<16x512xf32> to vector<16x384xf32>
    %c0_87 = arith.constant 0 : index
    %c0_88 = arith.constant 0 : index
    %123 = vector.load %arg5[%c0_87, %c0_88] : memref<16x1xf32, #tpu.memory_space<vmem>>, vector<16x1xf32>
    %124 = vector.broadcast %123 : vector<16x1xf32> to vector<16x384xf32>
    %125 = arith.addf %121, %124 : vector<16x384xf32>
    %126 = arith.addf %125, %122 : vector<16x384xf32>
    %c1_89 = arith.constant 1 : index
    %c0_90 = arith.constant 0 : index
    %c0_91 = arith.constant 0 : index
    %127 = vector.load %arg6[%c1_89, %c0_90, %c0_91] : memref<2x16x384xf32, #tpu.memory_space<vmem>>, vector<1x16x384xf32>
    %128 = vector.shape_cast %127 : vector<1x16x384xf32> to vector<16x384xf32>
    %129 = vector.shape_cast %126 : vector<16x384xf32> to vector<1x16x384xf32>
    tpu.vector_store %arg6[%c1_89, %c0_90, %c0_91], %129 {strides = array<i32>} : memref<2x16x384xf32, #tpu.memory_space<vmem>>, vector<1x16x384xf32>,
    return
  }
  func.func @transform_0(%arg0: i32) -> (i32, i32, i32) {
    %c0_i32 = arith.constant 0 : i32
    %c0_i32_0 = arith.constant 0 : i32
    %c0_i32_1 = arith.constant 0 : i32
    return %arg0, %c0_i32, %c0_i32_0 : i32, i32, i32
  }
  func.func @transform_1(%arg0: i32) -> (i32, i32, i32) {
    %c0_i32 = arith.constant 0 : i32
    %c0_i32_0 = arith.constant 0 : i32
    %c0_i32_1 = arith.constant 0 : i32
    %c0_i32_2 = arith.constant 0 : i32
    return %c0_i32, %c0_i32_0, %c0_i32_1 : i32, i32, i32
  }
  func.func @transform_2(%arg0: i32) -> (i32, i32) {
    %c0_i32 = arith.constant 0 : i32
    %c0_i32_0 = arith.constant 0 : i32
    %c0_i32_1 = arith.constant 0 : i32
    return %c0_i32, %c0_i32_0 : i32, i32
  }
  func.func @transform_3(%arg0: i32) -> (i32, i32) {
    %c0_i32 = arith.constant 0 : i32
    %c0_i32_0 = arith.constant 0 : i32
    %c0_i32_1 = arith.constant 0 : i32
    return %c0_i32, %c0_i32_0 : i32, i32
  }
  func.func @transform_4(%arg0: i32) -> (i32, i32) {
    %c0_i32 = arith.constant 0 : i32
    %c0_i32_0 = arith.constant 0 : i32
    %c0_i32_1 = arith.constant 0 : i32
    return %c0_i32, %c0_i32_0 : i32, i32
  }
  func.func @transform_5(%arg0: i32) -> (i32, i32, i32) {
    %c0_i32 = arith.constant 0 : i32
    %c0_i32_0 = arith.constant 0 : i32
    %c0_i32_1 = arith.constant 0 : i32
    return %arg0, %c0_i32, %c0_i32_0 : i32, i32, i32
  }
}

</mosaic_0001>

<llo_original>
// kernel: tpu_custom_call.1
$region0: #{tpu_custom_call.1}
  #allocation0 [shape = 'u32[]', space=smem, size = 0x4, offset = 0x4, fixed_abs, tag = 'smem constant byte address 0x4 - core index']
  #allocation1 [shape = 'u32[72,128]{1,0:T(1,128)}', space=vmem, size = 0x9000, scoped, tag = 'internal scratch']
  %s0 = inlined_call_operand.vmem [shape: f32[2,16,512], index: 0, kind: input, shape index: {}]
  %s1 = inlined_call_operand.vmem [shape: bf16[9,32,16], index: 1, kind: input, shape index: {}]
  %s2 = inlined_call_operand.vmem [shape: f32[32,1], index: 2, kind: input, shape index: {}]
  %s3 = inlined_call_operand.vmem [shape: bf16[16,32], index: 3, kind: input, shape index: {}]
  %s4 = inlined_call_operand.vmem [shape: f32[16,1], index: 4, kind: input, shape index: {}]
  %s5 = inlined_call_operand.hbm [shape: f32[2,16,384], index: 5, kind: output, shape index: {}]
  %s6 = sld [smem:[#allocation0]]
  $region30: #{tpu_custom_call.1} parent=0
    _
  %s8 = ssub.s32 1, %s6
  %s9 = scalar_select 0, %s8, %s6
  $region1: #{tpu_custom_call.1} parent=0
    #allocation2 [shape = 'u8[49152]{0}', space=vmem, size = 0xc000, scoped, tag = 'output window, operand 0, single buffered']
    #allocation3 [shape = 's32[1]{0}', space=sflag, size = 0x4, scoped, tag = 'scoped memory for tpu_custom_call.1']
    %10 = vsyncpa [#allocation3], 0
    // Predicated region
    $region2: #{tpu_custom_call.1} parent=1 // pred_check
      _
    $region3: #{tpu_custom_call.1} parent=1 // pred_check_branch
      %12 = sbr.rel (0) target = $region5
    $region4: #{tpu_custom_call.1} parent=1 // pred_region
      _
    $region5: #{tpu_custom_call.1} parent=1 // pred_fallthru
      _
    // Predicated region
    $region6: #{tpu_custom_call.1} parent=1 // pred_check
      _
    $region7: #{tpu_custom_call.1} parent=1 // pred_check_branch
      %14 = sbr.rel (0) target = $region9
    $region8: #{tpu_custom_call.1} parent=1 // pred_region
      _
    $region9: #{tpu_custom_call.1} parent=1 // pred_fallthru
      _
    // Predicated region
    $region10: #{tpu_custom_call.1} parent=1 // pred_check
      _
    $region11: #{tpu_custom_call.1} parent=1 // pred_check_branch
      %16 = sbr.rel (0) target = $region13
    $region12: #{tpu_custom_call.1} parent=1 // pred_region
      _
    $region13: #{tpu_custom_call.1} parent=1 // pred_fallthru
      _
    // Predicated region
    $region14: #{tpu_custom_call.1} parent=1 // pred_check
      _
    $region15: #{tpu_custom_call.1} parent=1 // pred_check_branch
      %18 = sbr.rel (0) target = $region17
    $region16: #{tpu_custom_call.1} parent=1 // pred_region
      _
    $region17: #{tpu_custom_call.1} parent=1 // pred_fallthru
      _
    // Predicated region
    $region18: #{tpu_custom_call.1} parent=1 // pred_check
      _
    $region19: #{tpu_custom_call.1} parent=1 // pred_check_branch
      %20 = sbr.rel (0) target = $region21
    $region20: #{tpu_custom_call.1} parent=1 // pred_region
      _
    $region21: #{tpu_custom_call.1} parent=1 // pred_fallthru
      _
    %v22 = vld [vmem:[%s0] sm:$0xff]
    %v23 = vld [vmem:[%s0 + $0x8] sm:$0xff]
    %v24 = vld [vmem:[%s0 + $0x10] sm:$0xff]
    %v25 = vld [vmem:[%s0 + $0x18] sm:$0xff]
    %v26 = vld [vmem:[%s0 + $0x20] sm:$0xff]
    %v27 = vld [vmem:[%s0 + $0x28] sm:$0xff]
    %v28 = vld [vmem:[%s0 + $0x30] sm:$0xff]
    %v29 = vld [vmem:[%s0 + $0x38] sm:$0xff]
    %v30 = vpack.c.bf16 %v23, %v22
    %v31 = vpack.c.bf16 %v25, %v24
    %v32 = vpack.c.bf16 %v27, %v26
    %v33 = vpack.c.bf16 %v29, %v28
    %v34 = vld [vmem:[%s1] sm:$0xf]
    %v35 = vld [vmem:[%s1 + $0x4] sm:$0xf]
    %v36 = vld [vmem:[%s1 + $0x8] sm:$0xf]
    %v37 = vld [vmem:[%s1 + $0xc] sm:$0xf]
    %s38 = scalar_lea.vmem %s1, 16
    %v39 = vld [vmem:[%s38] sm:$0xf]
    %v40 = vld [vmem:[%s38 + $0x4] sm:$0xf]
    %v41 = vld [vmem:[%s38 + $0x8] sm:$0xf]
    %v42 = vld [vmem:[%s38 + $0xc] sm:$0xf]
    %v47 = vunpack.c.l.b16 %v39
    %v48 = vunpack.c.l.b16 %v40
    %v49 = vunpack.c.l.b16 %v41
    %v50 = vunpack.c.l.b16 %v42
    %v51 = vpack.c.b16 %v48, %v47
    %v52 = vpack.c.b16 %v50, %v49
    %v57 = vunpack.c.l.b16 %v30
    %v58 = vunpack.c.h.b16 %v30
    %v59 = vunpack.c.l.b16 %v31
    %v60 = vunpack.c.h.b16 %v31
    %v61 = vunpack.c.l.b16 %v32
    %v62 = vunpack.c.h.b16 %v32
    %v63 = vunpack.c.l.b16 %v33
    %v64 = vunpack.c.h.b16 %v33
    %v65 = vpack.c.b16 %v61, %v57
    %v66 = vpack.c.b16 %v62, %v58
    %v67 = vpack.c.b16 %v63, %v59
    %v68 = vpack.c.b16 %v64, %v60
    %69 = vrot.lane.b32.xlu0 %v65, 127
    %v70 = vpop.permute.xlu0 %69
    %71 = vrot.lane.b32.xlu0 %v66, 127
    %v72 = vpop.permute.xlu0 %71
    %73 = vrot.lane.b32.xlu0 %v67, 127
    %v74 = vpop.permute.xlu0 %73
    %75 = vrot.lane.b32.xlu0 %v68, 127
    %v76 = vpop.permute.xlu0 %75
    %vm77 = vcmask 1039360
    %v78 = vsel %vm77, %v70, %v72
    %v79 = vsel %vm77, %v72, %v74
    %v80 = vsel %vm77, %v74, %v76
    %vm84 = vcmask 130048
    %v86 = vsel %vm84, %v51, 0
    %v89 = vsel %vm84, %v52, 0
    %91 = vmatpush.bf16.msra.mxu0 0
    %92 = vmatpush.bf16.msra.mxu0 0
    %93 = vmatpush.bf16.msra.mxu0 0
    %94 = vmatpush.bf16.msra.mxu0 0
    %95 = vmatpush.bf16.msra.mxu0 0
    %96 = vmatpush.bf16.msra.mxu0 0
    %97 = vmatpush.bf16.msra.mxu0 0
    %98 = vmatpush.bf16.msra.mxu0 %v78
    %99 = vmatmul.bf16.gmra.mxu0 %v86
    %v100 = vpop.f32.mrf.mxu0
    %v101 = vadd.f32 0.0, %v100
    %v102 = vpop.f32.mrf.mxu0
    %v103 = vadd.f32 0.0, %v102
    %104 = vmatmul.bf16.gmra.mxu0 %v89
    %v105 = vpop.f32.mrf.mxu0
    %v106 = vadd.f32 0.0, %v105
    %v107 = vpop.f32.mrf.mxu0
    %v108 = vadd.f32 0.0, %v107
    %109 = vdwg.mxu0
    %110 = vmatpush.bf16.msra.mxu0 0
    %111 = vmatpush.bf16.msra.mxu0 0
    %112 = vmatpush.bf16.msra.mxu0 0
    %113 = vmatpush.bf16.msra.mxu0 0
    %114 = vmatpush.bf16.msra.mxu0 0
    %115 = vmatpush.bf16.msra.mxu0 0
    %116 = vmatpush.bf16.msra.mxu0 0
    %117 = vmatpush.bf16.msra.mxu0 %v79
    %118 = vmatmul.bf16.gmra.mxu0 %v86
    %v119 = vpop.f32.mrf.mxu0
    %v120 = vadd.f32 0.0, %v119
    %v121 = vpop.f32.mrf.mxu0
    %v122 = vadd.f32 0.0, %v121
    %123 = vmatmul.bf16.gmra.mxu0 %v89
    %v124 = vpop.f32.mrf.mxu0
    %v125 = vadd.f32 0.0, %v124
    %v126 = vpop.f32.mrf.mxu0
    %v127 = vadd.f32 0.0, %v126
    %128 = vdwg.mxu0
    %129 = vmatpush.bf16.msra.mxu0 0
    %130 = vmatpush.bf16.msra.mxu0 0
    %131 = vmatpush.bf16.msra.mxu0 0
    %132 = vmatpush.bf16.msra.mxu0 0
    %133 = vmatpush.bf16.msra.mxu0 0
    %134 = vmatpush.bf16.msra.mxu0 0
    %135 = vmatpush.bf16.msra.mxu0 0
    %136 = vmatpush.bf16.msra.mxu0 %v80
    %137 = vmatmul.bf16.gmra.mxu0 %v86
    %v138 = vpop.f32.mrf.mxu0
    %v139 = vadd.f32 0.0, %v138
    %v140 = vpop.f32.mrf.mxu0
    %v141 = vadd.f32 0.0, %v140
    %142 = vmatmul.bf16.gmra.mxu0 %v89
    %v143 = vpop.f32.mrf.mxu0
    %v144 = vadd.f32 0.0, %v143
    %v145 = vpop.f32.mrf.mxu0
    %v146 = vadd.f32 0.0, %v145
    %147 = vdwg.mxu0
    %v152 = vunpack.c.l.b16 %v34
    %v153 = vunpack.c.l.b16 %v35
    %v154 = vunpack.c.l.b16 %v36
    %v155 = vunpack.c.l.b16 %v37
    %v156 = vpack.c.b16 %v153, %v152
    %v157 = vpack.c.b16 %v155, %v154
    %v162 = vsel %vm84, %v156, 0
    %v165 = vsel %vm84, %v157, 0
    %167 = vmatpush.bf16.msra.mxu0 0
    %168 = vmatpush.bf16.msra.mxu0 0
    %169 = vmatpush.bf16.msra.mxu0 0
    %170 = vmatpush.bf16.msra.mxu0 0
    %171 = vmatpush.bf16.msra.mxu0 0
    %172 = vmatpush.bf16.msra.mxu0 0
    %173 = vmatpush.bf16.msra.mxu0 0
    %174 = vmatpush.bf16.msra.mxu0 %v65
    %175 = vmatmul.bf16.gmra.mxu0 %v162
    %v176 = vpop.f32.mrf.mxu0
    %v177 = vadd.f32 %v101, %v176
    %v178 = vpop.f32.mrf.mxu0
    %v179 = vadd.f32 %v103, %v178
    %180 = vmatmul.bf16.gmra.mxu0 %v165
    %v181 = vpop.f32.mrf.mxu0
    %v182 = vadd.f32 %v106, %v181
    %v183 = vpop.f32.mrf.mxu0
    %v184 = vadd.f32 %v108, %v183
    %185 = vdwg.mxu0
    %186 = vmatpush.bf16.msra.mxu0 0
    %187 = vmatpush.bf16.msra.mxu0 0
    %188 = vmatpush.bf16.msra.mxu0 0
    %189 = vmatpush.bf16.msra.mxu0 0
    %190 = vmatpush.bf16.msra.mxu0 0
    %191 = vmatpush.bf16.msra.mxu0 0
    %192 = vmatpush.bf16.msra.mxu0 0
    %193 = vmatpush.bf16.msra.mxu0 %v66
    %194 = vmatmul.bf16.gmra.mxu0 %v162
    %v195 = vpop.f32.mrf.mxu0
    %v196 = vadd.f32 %v120, %v195
    %v197 = vpop.f32.mrf.mxu0
    %v198 = vadd.f32 %v122, %v197
    %199 = vmatmul.bf16.gmra.mxu0 %v165
    %v200 = vpop.f32.mrf.mxu0
    %v201 = vadd.f32 %v125, %v200
    %v202 = vpop.f32.mrf.mxu0
    %v203 = vadd.f32 %v127, %v202
    %204 = vdwg.mxu0
    %205 = vmatpush.bf16.msra.mxu0 0
    %206 = vmatpush.bf16.msra.mxu0 0
    %207 = vmatpush.bf16.msra.mxu0 0
    %208 = vmatpush.bf16.msra.mxu0 0
    %209 = vmatpush.bf16.msra.mxu0 0
    %210 = vmatpush.bf16.msra.mxu0 0
    %211 = vmatpush.bf16.msra.mxu0 0
    %212 = vmatpush.bf16.msra.mxu0 %v67
    %213 = vmatmul.bf16.gmra.mxu0 %v162
    %v214 = vpop.f32.mrf.mxu0
    %v215 = vadd.f32 %v139, %v214
    %v216 = vpop.f32.mrf.mxu0
    %v217 = vadd.f32 %v141, %v216
    %218 = vmatmul.bf16.gmra.mxu0 %v165
    %v219 = vpop.f32.mrf.mxu0
    %v220 = vadd.f32 %v144, %v219
    %v221 = vpop.f32.mrf.mxu0
    %v222 = vadd.f32 %v146, %v221
    %223 = vdwg.mxu0
    %s224 = scalar_lea.vmem %s1, 32
    %v225 = vld [vmem:[%s224] sm:$0xf]
    %v226 = vld [vmem:[%s224 + $0x4] sm:$0xf]
    %v227 = vld [vmem:[%s224 + $0x8] sm:$0xf]
    %v228 = vld [vmem:[%s224 + $0xc] sm:$0xf]
    %v233 = vunpack.c.l.b16 %v225
    %v234 = vunpack.c.l.b16 %v226
    %v235 = vunpack.c.l.b16 %v227
    %v236 = vunpack.c.l.b16 %v228
    %v237 = vpack.c.b16 %v234, %v233
    %v238 = vpack.c.b16 %v236, %v235
    %239 = vrot.lane.b32.xlu0 %v65, 126
    %v240 = vpop.permute.xlu0 %239
    %241 = vrot.lane.b32.xlu0 %v66, 126
    %v242 = vpop.permute.xlu0 %241
    %243 = vrot.lane.b32.xlu0 %v67, 126
    %v244 = vpop.permute.xlu0 %243
    %245 = vrot.lane.b32.xlu0 %v68, 126
    %v246 = vpop.permute.xlu0 %245
    %vm247 = vcmask 1031168
    %v248 = vsel %vm247, %v240, %v242
    %v249 = vsel %vm247, %v242, %v244
    %v250 = vsel %vm247, %v244, %v246
    %v255 = vsel %vm84, %v237, 0
    %v258 = vsel %vm84, %v238, 0
    %260 = vmatpush.bf16.msra.mxu0 0
    %261 = vmatpush.bf16.msra.mxu0 0
    %262 = vmatpush.bf16.msra.mxu0 0
    %263 = vmatpush.bf16.msra.mxu0 0
    %264 = vmatpush.bf16.msra.mxu0 0
    %265 = vmatpush.bf16.msra.mxu0 0
    %266 = vmatpush.bf16.msra.mxu0 0
    %267 = vmatpush.bf16.msra.mxu0 %v248
    %268 = vmatmul.bf16.gmra.mxu0 %v255
    %v269 = vpop.f32.mrf.mxu0
    %v270 = vadd.f32 0.0, %v269
    %v271 = vpop.f32.mrf.mxu0
    %v272 = vadd.f32 0.0, %v271
    %273 = vmatmul.bf16.gmra.mxu0 %v258
    %v274 = vpop.f32.mrf.mxu0
    %v275 = vadd.f32 0.0, %v274
    %v276 = vpop.f32.mrf.mxu0
    %v277 = vadd.f32 0.0, %v276
    %278 = vdwg.mxu0
    %279 = vmatpush.bf16.msra.mxu0 0
    %280 = vmatpush.bf16.msra.mxu0 0
    %281 = vmatpush.bf16.msra.mxu0 0
    %282 = vmatpush.bf16.msra.mxu0 0
    %283 = vmatpush.bf16.msra.mxu0 0
    %284 = vmatpush.bf16.msra.mxu0 0
    %285 = vmatpush.bf16.msra.mxu0 0
    %286 = vmatpush.bf16.msra.mxu0 %v249
    %287 = vmatmul.bf16.gmra.mxu0 %v255
    %v288 = vpop.f32.mrf.mxu0
    %v289 = vadd.f32 0.0, %v288
    %v290 = vpop.f32.mrf.mxu0
    %v291 = vadd.f32 0.0, %v290
    %292 = vmatmul.bf16.gmra.mxu0 %v258
    %v293 = vpop.f32.mrf.mxu0
    %v294 = vadd.f32 0.0, %v293
    %v295 = vpop.f32.mrf.mxu0
    %v296 = vadd.f32 0.0, %v295
    %297 = vdwg.mxu0
    %298 = vmatpush.bf16.msra.mxu0 0
    %299 = vmatpush.bf16.msra.mxu0 0
    %300 = vmatpush.bf16.msra.mxu0 0
    %301 = vmatpush.bf16.msra.mxu0 0
    %302 = vmatpush.bf16.msra.mxu0 0
    %303 = vmatpush.bf16.msra.mxu0 0
    %304 = vmatpush.bf16.msra.mxu0 0
    %305 = vmatpush.bf16.msra.mxu0 %v250
    %306 = vmatmul.bf16.gmra.mxu0 %v255
    %v307 = vpop.f32.mrf.mxu0
    %v308 = vadd.f32 0.0, %v307
    %v309 = vpop.f32.mrf.mxu0
    %v310 = vadd.f32 0.0, %v309
    %311 = vmatmul.bf16.gmra.mxu0 %v258
    %v312 = vpop.f32.mrf.mxu0
    %v313 = vadd.f32 0.0, %v312
    %v314 = vpop.f32.mrf.mxu0
    %v315 = vadd.f32 0.0, %v314
    %316 = vdwg.mxu0
    %v317 = vadd.f32 %v177, %v270
    %v318 = vadd.f32 %v196, %v289
    %v319 = vadd.f32 %v215, %v308
    %v320 = vadd.f32 %v179, %v272
    %v321 = vadd.f32 %v198, %v291
    %v322 = vadd.f32 %v217, %v310
    %v323 = vadd.f32 %v182, %v275
    %v324 = vadd.f32 %v201, %v294
    %v325 = vadd.f32 %v220, %v313
    %v326 = vadd.f32 %v184, %v277
    %v327 = vadd.f32 %v203, %v296
    %v328 = vadd.f32 %v222, %v315
    %s329 = scalar_lea.vmem %s1, 48
    %v330 = vld [vmem:[%s329] sm:$0xf]
    %v331 = vld [vmem:[%s329 + $0x4] sm:$0xf]
    %v332 = vld [vmem:[%s329 + $0x8] sm:$0xf]
    %v333 = vld [vmem:[%s329 + $0xc] sm:$0xf]
    %v338 = vunpack.c.l.b16 %v330
    %v339 = vunpack.c.l.b16 %v331
    %v340 = vunpack.c.l.b16 %v332
    %v341 = vunpack.c.l.b16 %v333
    %v342 = vpack.c.b16 %v339, %v338
    %v343 = vpack.c.b16 %v341, %v340
    %344 = vrot.lane.b32.xlu0 %v65, 110
    %v345 = vpop.permute.xlu0 %344
    %346 = vrot.lane.b32.xlu0 %v66, 110
    %v347 = vpop.permute.xlu0 %346
    %348 = vrot.lane.b32.xlu0 %v67, 110
    %v349 = vpop.permute.xlu0 %348
    %350 = vrot.lane.b32.xlu0 %v68, 110
    %v351 = vpop.permute.xlu0 %350
    %vm352 = vcmask 900096
    %v353 = vsel %vm352, %v345, %v347
    %v354 = vsel %vm352, %v347, %v349
    %v355 = vsel %vm352, %v349, %v351
    %v360 = vsel %vm84, %v342, 0
    %v363 = vsel %vm84, %v343, 0
    %365 = vmatpush.bf16.msra.mxu0 0
    %366 = vmatpush.bf16.msra.mxu0 0
    %367 = vmatpush.bf16.msra.mxu0 0
    %368 = vmatpush.bf16.msra.mxu0 0
    %369 = vmatpush.bf16.msra.mxu0 0
    %370 = vmatpush.bf16.msra.mxu0 0
    %371 = vmatpush.bf16.msra.mxu0 0
    %372 = vmatpush.bf16.msra.mxu0 %v353
    %373 = vmatmul.bf16.gmra.mxu0 %v360
    %v374 = vpop.f32.mrf.mxu0
    %v375 = vadd.f32 0.0, %v374
    %v376 = vpop.f32.mrf.mxu0
    %v377 = vadd.f32 0.0, %v376
    %378 = vmatmul.bf16.gmra.mxu0 %v363
    %v379 = vpop.f32.mrf.mxu0
    %v380 = vadd.f32 0.0, %v379
    %v381 = vpop.f32.mrf.mxu0
    %v382 = vadd.f32 0.0, %v381
    %383 = vdwg.mxu0
    %384 = vmatpush.bf16.msra.mxu0 0
    %385 = vmatpush.bf16.msra.mxu0 0
    %386 = vmatpush.bf16.msra.mxu0 0
    %387 = vmatpush.bf16.msra.mxu0 0
    %388 = vmatpush.bf16.msra.mxu0 0
    %389 = vmatpush.bf16.msra.mxu0 0
    %390 = vmatpush.bf16.msra.mxu0 0
    %391 = vmatpush.bf16.msra.mxu0 %v354
    %392 = vmatmul.bf16.gmra.mxu0 %v360
    %v393 = vpop.f32.mrf.mxu0
    %v394 = vadd.f32 0.0, %v393
    %v395 = vpop.f32.mrf.mxu0
    %v396 = vadd.f32 0.0, %v395
    %397 = vmatmul.bf16.gmra.mxu0 %v363
    %v398 = vpop.f32.mrf.mxu0
    %v399 = vadd.f32 0.0, %v398
    %v400 = vpop.f32.mrf.mxu0
    %v401 = vadd.f32 0.0, %v400
    %402 = vdwg.mxu0
    %403 = vmatpush.bf16.msra.mxu0 0
    %404 = vmatpush.bf16.msra.mxu0 0
    %405 = vmatpush.bf16.msra.mxu0 0
    %406 = vmatpush.bf16.msra.mxu0 0
    %407 = vmatpush.bf16.msra.mxu0 0
    %408 = vmatpush.bf16.msra.mxu0 0
    %409 = vmatpush.bf16.msra.mxu0 0
    %410 = vmatpush.bf16.msra.mxu0 %v355
    %411 = vmatmul.bf16.gmra.mxu0 %v360
    %v412 = vpop.f32.mrf.mxu0
    %v413 = vadd.f32 0.0, %v412
    %v414 = vpop.f32.mrf.mxu0
    %v415 = vadd.f32 0.0, %v414
    %416 = vmatmul.bf16.gmra.mxu0 %v363
    %v417 = vpop.f32.mrf.mxu0
    %v418 = vadd.f32 0.0, %v417
    %v419 = vpop.f32.mrf.mxu0
    %v420 = vadd.f32 0.0, %v419
    %421 = vdwg.mxu0
    %v422 = vadd.f32 %v317, %v375
    %v423 = vadd.f32 %v318, %v394
    %v424 = vadd.f32 %v319, %v413
    %v425 = vadd.f32 %v320, %v377
    %v426 = vadd.f32 %v321, %v396
    %v427 = vadd.f32 %v322, %v415
    %v428 = vadd.f32 %v323, %v380
    %v429 = vadd.f32 %v324, %v399
    %v430 = vadd.f32 %v325, %v418
    %v431 = vadd.f32 %v326, %v382
    %v432 = vadd.f32 %v327, %v401
    %v433 = vadd.f32 %v328, %v420
    %s434 = scalar_lea.vmem %s1, 64
    %v435 = vld [vmem:[%s434] sm:$0xf]
    %v436 = vld [vmem:[%s434 + $0x4] sm:$0xf]
    %v437 = vld [vmem:[%s434 + $0x8] sm:$0xf]
    %v438 = vld [vmem:[%s434 + $0xc] sm:$0xf]
    %v443 = vunpack.c.l.b16 %v435
    %v444 = vunpack.c.l.b16 %v436
    %v445 = vunpack.c.l.b16 %v437
    %v446 = vunpack.c.l.b16 %v438
    %v447 = vpack.c.b16 %v444, %v443
    %v448 = vpack.c.b16 %v446, %v445
    %449 = vrot.lane.b32.xlu0 %v65, 109
    %v450 = vpop.permute.xlu0 %449
    %451 = vrot.lane.b32.xlu0 %v66, 109
    %v452 = vpop.permute.xlu0 %451
    %453 = vrot.lane.b32.xlu0 %v67, 109
    %v454 = vpop.permute.xlu0 %453
    %455 = vrot.lane.b32.xlu0 %v68, 109
    %v456 = vpop.permute.xlu0 %455
    %vm457 = vcmask 891904
    %v458 = vsel %vm457, %v450, %v452
    %v459 = vsel %vm457, %v452, %v454
    %v460 = vsel %vm457, %v454, %v456
    %v465 = vsel %vm84, %v447, 0
    %v468 = vsel %vm84, %v448, 0
    %470 = vmatpush.bf16.msra.mxu0 0
    %471 = vmatpush.bf16.msra.mxu0 0
    %472 = vmatpush.bf16.msra.mxu0 0
    %473 = vmatpush.bf16.msra.mxu0 0
    %474 = vmatpush.bf16.msra.mxu0 0
    %475 = vmatpush.bf16.msra.mxu0 0
    %476 = vmatpush.bf16.msra.mxu0 0
    %477 = vmatpush.bf16.msra.mxu0 %v458
    %478 = vmatmul.bf16.gmra.mxu0 %v465
    %v479 = vpop.f32.mrf.mxu0
    %v480 = vadd.f32 0.0, %v479
    %v481 = vpop.f32.mrf.mxu0
    %v482 = vadd.f32 0.0, %v481
    %483 = vmatmul.bf16.gmra.mxu0 %v468
    %v484 = vpop.f32.mrf.mxu0
    %v485 = vadd.f32 0.0, %v484
    %v486 = vpop.f32.mrf.mxu0
    %v487 = vadd.f32 0.0, %v486
    %488 = vdwg.mxu0
    %489 = vmatpush.bf16.msra.mxu0 0
    %490 = vmatpush.bf16.msra.mxu0 0
    %491 = vmatpush.bf16.msra.mxu0 0
    %492 = vmatpush.bf16.msra.mxu0 0
    %493 = vmatpush.bf16.msra.mxu0 0
    %494 = vmatpush.bf16.msra.mxu0 0
    %495 = vmatpush.bf16.msra.mxu0 0
    %496 = vmatpush.bf16.msra.mxu0 %v459
    %497 = vmatmul.bf16.gmra.mxu0 %v465
    %v498 = vpop.f32.mrf.mxu0
    %v499 = vadd.f32 0.0, %v498
    %v500 = vpop.f32.mrf.mxu0
    %v501 = vadd.f32 0.0, %v500
    %502 = vmatmul.bf16.gmra.mxu0 %v468
    %v503 = vpop.f32.mrf.mxu0
    %v504 = vadd.f32 0.0, %v503
    %v505 = vpop.f32.mrf.mxu0
    %v506 = vadd.f32 0.0, %v505
    %507 = vdwg.mxu0
    %508 = vmatpush.bf16.msra.mxu0 0
    %509 = vmatpush.bf16.msra.mxu0 0
    %510 = vmatpush.bf16.msra.mxu0 0
    %511 = vmatpush.bf16.msra.mxu0 0
    %512 = vmatpush.bf16.msra.mxu0 0
    %513 = vmatpush.bf16.msra.mxu0 0
    %514 = vmatpush.bf16.msra.mxu0 0
    %515 = vmatpush.bf16.msra.mxu0 %v460
    %516 = vmatmul.bf16.gmra.mxu0 %v465
    %v517 = vpop.f32.mrf.mxu0
    %v518 = vadd.f32 0.0, %v517
    %v519 = vpop.f32.mrf.mxu0
    %v520 = vadd.f32 0.0, %v519
    %521 = vmatmul.bf16.gmra.mxu0 %v468
    %v522 = vpop.f32.mrf.mxu0
    %v523 = vadd.f32 0.0, %v522
    %v524 = vpop.f32.mrf.mxu0
    %v525 = vadd.f32 0.0, %v524
    %526 = vdwg.mxu0
    %v527 = vadd.f32 %v422, %v480
    %v528 = vadd.f32 %v423, %v499
    %v529 = vadd.f32 %v424, %v518
    %v530 = vadd.f32 %v425, %v482
    %v531 = vadd.f32 %v426, %v501
    %v532 = vadd.f32 %v427, %v520
    %v533 = vadd.f32 %v428, %v485
    %v534 = vadd.f32 %v429, %v504
    %v535 = vadd.f32 %v430, %v523
    %v536 = vadd.f32 %v431, %v487
    %v537 = vadd.f32 %v432, %v506
    %v538 = vadd.f32 %v433, %v525
    %s539 = scalar_lea.vmem %s1, 80
    %v540 = vld [vmem:[%s539] sm:$0xf]
    %v541 = vld [vmem:[%s539 + $0x4] sm:$0xf]
    %v542 = vld [vmem:[%s539 + $0x8] sm:$0xf]
    %v543 = vld [vmem:[%s539 + $0xc] sm:$0xf]
    %v548 = vunpack.c.l.b16 %v540
    %v549 = vunpack.c.l.b16 %v541
    %v550 = vunpack.c.l.b16 %v542
    %v551 = vunpack.c.l.b16 %v543
    %v552 = vpack.c.b16 %v549, %v548
    %v553 = vpack.c.b16 %v551, %v550
    %554 = vrot.lane.b32.xlu0 %v65, 108
    %v555 = vpop.permute.xlu0 %554
    %556 = vrot.lane.b32.xlu0 %v66, 108
    %v557 = vpop.permute.xlu0 %556
    %558 = vrot.lane.b32.xlu0 %v67, 108
    %v559 = vpop.permute.xlu0 %558
    %560 = vrot.lane.b32.xlu0 %v68, 108
    %v561 = vpop.permute.xlu0 %560
    %vm562 = vcmask 883712
    %v563 = vsel %vm562, %v555, %v557
    %v564 = vsel %vm562, %v557, %v559
    %v565 = vsel %vm562, %v559, %v561
    %v570 = vsel %vm84, %v552, 0
    %v573 = vsel %vm84, %v553, 0
    %575 = vmatpush.bf16.msra.mxu0 0
    %576 = vmatpush.bf16.msra.mxu0 0
    %577 = vmatpush.bf16.msra.mxu0 0
    %578 = vmatpush.bf16.msra.mxu0 0
    %579 = vmatpush.bf16.msra.mxu0 0
    %580 = vmatpush.bf16.msra.mxu0 0
    %581 = vmatpush.bf16.msra.mxu0 0
    %582 = vmatpush.bf16.msra.mxu0 %v563
    %583 = vmatmul.bf16.gmra.mxu0 %v570
    %v584 = vpop.f32.mrf.mxu0
    %v585 = vadd.f32 0.0, %v584
    %v586 = vpop.f32.mrf.mxu0
    %v587 = vadd.f32 0.0, %v586
    %588 = vmatmul.bf16.gmra.mxu0 %v573
    %v589 = vpop.f32.mrf.mxu0
    %v590 = vadd.f32 0.0, %v589
    %v591 = vpop.f32.mrf.mxu0
    %v592 = vadd.f32 0.0, %v591
    %593 = vdwg.mxu0
    %594 = vmatpush.bf16.msra.mxu0 0
    %595 = vmatpush.bf16.msra.mxu0 0
    %596 = vmatpush.bf16.msra.mxu0 0
    %597 = vmatpush.bf16.msra.mxu0 0
    %598 = vmatpush.bf16.msra.mxu0 0
    %599 = vmatpush.bf16.msra.mxu0 0
    %600 = vmatpush.bf16.msra.mxu0 0
    %601 = vmatpush.bf16.msra.mxu0 %v564
    %602 = vmatmul.bf16.gmra.mxu0 %v570
    %v603 = vpop.f32.mrf.mxu0
    %v604 = vadd.f32 0.0, %v603
    %v605 = vpop.f32.mrf.mxu0
    %v606 = vadd.f32 0.0, %v605
    %607 = vmatmul.bf16.gmra.mxu0 %v573
    %v608 = vpop.f32.mrf.mxu0
    %v609 = vadd.f32 0.0, %v608
    %v610 = vpop.f32.mrf.mxu0
    %v611 = vadd.f32 0.0, %v610
    %612 = vdwg.mxu0
    %613 = vmatpush.bf16.msra.mxu0 0
    %614 = vmatpush.bf16.msra.mxu0 0
    %615 = vmatpush.bf16.msra.mxu0 0
    %616 = vmatpush.bf16.msra.mxu0 0
    %617 = vmatpush.bf16.msra.mxu0 0
    %618 = vmatpush.bf16.msra.mxu0 0
    %619 = vmatpush.bf16.msra.mxu0 0
    %620 = vmatpush.bf16.msra.mxu0 %v565
    %621 = vmatmul.bf16.gmra.mxu0 %v570
    %v622 = vpop.f32.mrf.mxu0
    %v623 = vadd.f32 0.0, %v622
    %v624 = vpop.f32.mrf.mxu0
    %v625 = vadd.f32 0.0, %v624
    %626 = vmatmul.bf16.gmra.mxu0 %v573
    %v627 = vpop.f32.mrf.mxu0
    %v628 = vadd.f32 0.0, %v627
    %v629 = vpop.f32.mrf.mxu0
    %v630 = vadd.f32 0.0, %v629
    %631 = vdwg.mxu0
    %v632 = vadd.f32 %v527, %v585
    %v633 = vadd.f32 %v528, %v604
    %v634 = vadd.f32 %v529, %v623
    %v635 = vadd.f32 %v530, %v587
    %v636 = vadd.f32 %v531, %v606
    %v637 = vadd.f32 %v532, %v625
    %v638 = vadd.f32 %v533, %v590
    %v639 = vadd.f32 %v534, %v609
    %v640 = vadd.f32 %v535, %v628
    %v641 = vadd.f32 %v536, %v592
    %v642 = vadd.f32 %v537, %v611
    %v643 = vadd.f32 %v538, %v630
    %s644 = scalar_lea.vmem %s1, 96
    %v645 = vld [vmem:[%s644] sm:$0xf]
    %v646 = vld [vmem:[%s644 + $0x4] sm:$0xf]
    %v647 = vld [vmem:[%s644 + $0x8] sm:$0xf]
    %v648 = vld [vmem:[%s644 + $0xc] sm:$0xf]
    %v653 = vunpack.c.l.b16 %v645
    %v654 = vunpack.c.l.b16 %v646
    %v655 = vunpack.c.l.b16 %v647
    %v656 = vunpack.c.l.b16 %v648
    %v657 = vpack.c.b16 %v654, %v653
    %v658 = vpack.c.b16 %v656, %v655
    %659 = vrot.lane.b32.xlu0 %v65, 92
    %v660 = vpop.permute.xlu0 %659
    %661 = vrot.lane.b32.xlu0 %v66, 92
    %v662 = vpop.permute.xlu0 %661
    %663 = vrot.lane.b32.xlu0 %v67, 92
    %v664 = vpop.permute.xlu0 %663
    %665 = vrot.lane.b32.xlu0 %v68, 92
    %v666 = vpop.permute.xlu0 %665
    %vm667 = vcmask 752640
    %v668 = vsel %vm667, %v660, %v662
    %v669 = vsel %vm667, %v662, %v664
    %v670 = vsel %vm667, %v664, %v666
    %v675 = vsel %vm84, %v657, 0
    %v678 = vsel %vm84, %v658, 0
    %680 = vmatpush.bf16.msra.mxu0 0
    %681 = vmatpush.bf16.msra.mxu0 0
    %682 = vmatpush.bf16.msra.mxu0 0
    %683 = vmatpush.bf16.msra.mxu0 0
    %684 = vmatpush.bf16.msra.mxu0 0
    %685 = vmatpush.bf16.msra.mxu0 0
    %686 = vmatpush.bf16.msra.mxu0 0
    %687 = vmatpush.bf16.msra.mxu0 %v668
    %688 = vmatmul.bf16.gmra.mxu0 %v675
    %v689 = vpop.f32.mrf.mxu0
    %v690 = vadd.f32 0.0, %v689
    %v691 = vpop.f32.mrf.mxu0
    %v692 = vadd.f32 0.0, %v691
    %693 = vmatmul.bf16.gmra.mxu0 %v678
    %v694 = vpop.f32.mrf.mxu0
    %v695 = vadd.f32 0.0, %v694
    %v696 = vpop.f32.mrf.mxu0
    %v697 = vadd.f32 0.0, %v696
    %698 = vdwg.mxu0
    %699 = vmatpush.bf16.msra.mxu0 0
    %700 = vmatpush.bf16.msra.mxu0 0
    %701 = vmatpush.bf16.msra.mxu0 0
    %702 = vmatpush.bf16.msra.mxu0 0
    %703 = vmatpush.bf16.msra.mxu0 0
    %704 = vmatpush.bf16.msra.mxu0 0
    %705 = vmatpush.bf16.msra.mxu0 0
    %706 = vmatpush.bf16.msra.mxu0 %v669
    %707 = vmatmul.bf16.gmra.mxu0 %v675
    %v708 = vpop.f32.mrf.mxu0
    %v709 = vadd.f32 0.0, %v708
    %v710 = vpop.f32.mrf.mxu0
    %v711 = vadd.f32 0.0, %v710
    %712 = vmatmul.bf16.gmra.mxu0 %v678
    %v713 = vpop.f32.mrf.mxu0
    %v714 = vadd.f32 0.0, %v713
    %v715 = vpop.f32.mrf.mxu0
    %v716 = vadd.f32 0.0, %v715
    %717 = vdwg.mxu0
    %718 = vmatpush.bf16.msra.mxu0 0
    %719 = vmatpush.bf16.msra.mxu0 0
    %720 = vmatpush.bf16.msra.mxu0 0
    %721 = vmatpush.bf16.msra.mxu0 0
    %722 = vmatpush.bf16.msra.mxu0 0
    %723 = vmatpush.bf16.msra.mxu0 0
    %724 = vmatpush.bf16.msra.mxu0 0
    %725 = vmatpush.bf16.msra.mxu0 %v670
    %726 = vmatmul.bf16.gmra.mxu0 %v675
    %v727 = vpop.f32.mrf.mxu0
    %v728 = vadd.f32 0.0, %v727
    %v729 = vpop.f32.mrf.mxu0
    %v730 = vadd.f32 0.0, %v729
    %731 = vmatmul.bf16.gmra.mxu0 %v678
    %v732 = vpop.f32.mrf.mxu0
    %v733 = vadd.f32 0.0, %v732
    %v734 = vpop.f32.mrf.mxu0
    %v735 = vadd.f32 0.0, %v734
    %736 = vdwg.mxu0
    %v737 = vadd.f32 %v632, %v690
    %v738 = vadd.f32 %v633, %v709
    %v739 = vadd.f32 %v634, %v728
    %v740 = vadd.f32 %v635, %v692
    %v741 = vadd.f32 %v636, %v711
    %v742 = vadd.f32 %v637, %v730
    %v743 = vadd.f32 %v638, %v695
    %v744 = vadd.f32 %v639, %v714
    %v745 = vadd.f32 %v640, %v733
    %v746 = vadd.f32 %v641, %v697
    %v747 = vadd.f32 %v642, %v716
    %v748 = vadd.f32 %v643, %v735
    %s749 = scalar_lea.vmem %s1, 112
    %v750 = vld [vmem:[%s749] sm:$0xf]
    %v751 = vld [vmem:[%s749 + $0x4] sm:$0xf]
    %v752 = vld [vmem:[%s749 + $0x8] sm:$0xf]
    %v753 = vld [vmem:[%s749 + $0xc] sm:$0xf]
    %v758 = vunpack.c.l.b16 %v750
    %v759 = vunpack.c.l.b16 %v751
    %v760 = vunpack.c.l.b16 %v752
    %v761 = vunpack.c.l.b16 %v753
    %v762 = vpack.c.b16 %v759, %v758
    %v763 = vpack.c.b16 %v761, %v760
    %764 = vrot.lane.b32.xlu0 %v65, 91
    %v765 = vpop.permute.xlu0 %764
    %766 = vrot.lane.b32.xlu0 %v66, 91
    %v767 = vpop.permute.xlu0 %766
    %768 = vrot.lane.b32.xlu0 %v67, 91
    %v769 = vpop.permute.xlu0 %768
    %770 = vrot.lane.b32.xlu0 %v68, 91
    %v771 = vpop.permute.xlu0 %770
    %vm772 = vcmask 744448
    %v773 = vsel %vm772, %v765, %v767
    %v774 = vsel %vm772, %v767, %v769
    %v775 = vsel %vm772, %v769, %v771
    %v780 = vsel %vm84, %v762, 0
    %v783 = vsel %vm84, %v763, 0
    %785 = vmatpush.bf16.msra.mxu0 0
    %786 = vmatpush.bf16.msra.mxu0 0
    %787 = vmatpush.bf16.msra.mxu0 0
    %788 = vmatpush.bf16.msra.mxu0 0
    %789 = vmatpush.bf16.msra.mxu0 0
    %790 = vmatpush.bf16.msra.mxu0 0
    %791 = vmatpush.bf16.msra.mxu0 0
    %792 = vmatpush.bf16.msra.mxu0 %v773
    %793 = vmatmul.bf16.gmra.mxu0 %v780
    %v794 = vpop.f32.mrf.mxu0
    %v795 = vadd.f32 0.0, %v794
    %v796 = vpop.f32.mrf.mxu0
    %v797 = vadd.f32 0.0, %v796
    %798 = vmatmul.bf16.gmra.mxu0 %v783
    %v799 = vpop.f32.mrf.mxu0
    %v800 = vadd.f32 0.0, %v799
    %v801 = vpop.f32.mrf.mxu0
    %v802 = vadd.f32 0.0, %v801
    %803 = vdwg.mxu0
    %804 = vmatpush.bf16.msra.mxu0 0
    %805 = vmatpush.bf16.msra.mxu0 0
    %806 = vmatpush.bf16.msra.mxu0 0
    %807 = vmatpush.bf16.msra.mxu0 0
    %808 = vmatpush.bf16.msra.mxu0 0
    %809 = vmatpush.bf16.msra.mxu0 0
    %810 = vmatpush.bf16.msra.mxu0 0
    %811 = vmatpush.bf16.msra.mxu0 %v774
    %812 = vmatmul.bf16.gmra.mxu0 %v780
    %v813 = vpop.f32.mrf.mxu0
    %v814 = vadd.f32 0.0, %v813
    %v815 = vpop.f32.mrf.mxu0
    %v816 = vadd.f32 0.0, %v815
    %817 = vmatmul.bf16.gmra.mxu0 %v783
    %v818 = vpop.f32.mrf.mxu0
    %v819 = vadd.f32 0.0, %v818
    %v820 = vpop.f32.mrf.mxu0
    %v821 = vadd.f32 0.0, %v820
    %822 = vdwg.mxu0
    %823 = vmatpush.bf16.msra.mxu0 0
    %824 = vmatpush.bf16.msra.mxu0 0
    %825 = vmatpush.bf16.msra.mxu0 0
    %826 = vmatpush.bf16.msra.mxu0 0
    %827 = vmatpush.bf16.msra.mxu0 0
    %828 = vmatpush.bf16.msra.mxu0 0
    %829 = vmatpush.bf16.msra.mxu0 0
    %830 = vmatpush.bf16.msra.mxu0 %v775
    %831 = vmatmul.bf16.gmra.mxu0 %v780
    %v832 = vpop.f32.mrf.mxu0
    %v833 = vadd.f32 0.0, %v832
    %v834 = vpop.f32.mrf.mxu0
    %v835 = vadd.f32 0.0, %v834
    %836 = vmatmul.bf16.gmra.mxu0 %v783
    %v837 = vpop.f32.mrf.mxu0
    %v838 = vadd.f32 0.0, %v837
    %v839 = vpop.f32.mrf.mxu0
    %v840 = vadd.f32 0.0, %v839
    %841 = vdwg.mxu0
    %v842 = vadd.f32 %v737, %v795
    %v843 = vadd.f32 %v738, %v814
    %v844 = vadd.f32 %v739, %v833
    %v845 = vadd.f32 %v740, %v797
    %v846 = vadd.f32 %v741, %v816
    %v847 = vadd.f32 %v742, %v835
    %v848 = vadd.f32 %v743, %v800
    %v849 = vadd.f32 %v744, %v819
    %v850 = vadd.f32 %v745, %v838
    %v851 = vadd.f32 %v746, %v802
    %v852 = vadd.f32 %v747, %v821
    %v853 = vadd.f32 %v748, %v840
    %s854 = scalar_lea.vmem %s1, 128
    %v855 = vld [vmem:[%s854] sm:$0xf]
    %v856 = vld [vmem:[%s854 + $0x4] sm:$0xf]
    %v857 = vld [vmem:[%s854 + $0x8] sm:$0xf]
    %v858 = vld [vmem:[%s854 + $0xc] sm:$0xf]
    %v863 = vunpack.c.l.b16 %v855
    %v864 = vunpack.c.l.b16 %v856
    %v865 = vunpack.c.l.b16 %v857
    %v866 = vunpack.c.l.b16 %v858
    %v867 = vpack.c.b16 %v864, %v863
    %v868 = vpack.c.b16 %v866, %v865
    %869 = vrot.lane.b32.xlu0 %v65, 90
    %v870 = vpop.permute.xlu0 %869
    %871 = vrot.lane.b32.xlu0 %v66, 90
    %v872 = vpop.permute.xlu0 %871
    %873 = vrot.lane.b32.xlu0 %v67, 90
    %v874 = vpop.permute.xlu0 %873
    %875 = vrot.lane.b32.xlu0 %v68, 90
    %v876 = vpop.permute.xlu0 %875
    %vm877 = vcmask 736256
    %v878 = vsel %vm877, %v870, %v872
    %v879 = vsel %vm877, %v872, %v874
    %v880 = vsel %vm877, %v874, %v876
    %v885 = vsel %vm84, %v867, 0
    %v888 = vsel %vm84, %v868, 0
    %890 = vmatpush.bf16.msra.mxu0 0
    %891 = vmatpush.bf16.msra.mxu0 0
    %892 = vmatpush.bf16.msra.mxu0 0
    %893 = vmatpush.bf16.msra.mxu0 0
    %894 = vmatpush.bf16.msra.mxu0 0
    %895 = vmatpush.bf16.msra.mxu0 0
    %896 = vmatpush.bf16.msra.mxu0 0
    %897 = vmatpush.bf16.msra.mxu0 %v878
    %898 = vmatmul.bf16.gmra.mxu0 %v885
    %v899 = vpop.f32.mrf.mxu0
    %v900 = vadd.f32 0.0, %v899
    %v901 = vpop.f32.mrf.mxu0
    %v902 = vadd.f32 0.0, %v901
    %903 = vmatmul.bf16.gmra.mxu0 %v888
    %v904 = vpop.f32.mrf.mxu0
    %v905 = vadd.f32 0.0, %v904
    %v906 = vpop.f32.mrf.mxu0
    %v907 = vadd.f32 0.0, %v906
    %908 = vdwg.mxu0
    %909 = vmatpush.bf16.msra.mxu0 0
    %910 = vmatpush.bf16.msra.mxu0 0
    %911 = vmatpush.bf16.msra.mxu0 0
    %912 = vmatpush.bf16.msra.mxu0 0
    %913 = vmatpush.bf16.msra.mxu0 0
    %914 = vmatpush.bf16.msra.mxu0 0
    %915 = vmatpush.bf16.msra.mxu0 0
    %916 = vmatpush.bf16.msra.mxu0 %v879
    %917 = vmatmul.bf16.gmra.mxu0 %v885
    %v918 = vpop.f32.mrf.mxu0
    %v919 = vadd.f32 0.0, %v918
    %v920 = vpop.f32.mrf.mxu0
    %v921 = vadd.f32 0.0, %v920
    %922 = vmatmul.bf16.gmra.mxu0 %v888
    %v923 = vpop.f32.mrf.mxu0
    %v924 = vadd.f32 0.0, %v923
    %v925 = vpop.f32.mrf.mxu0
    %v926 = vadd.f32 0.0, %v925
    %927 = vdwg.mxu0
    %928 = vmatpush.bf16.msra.mxu0 0
    %929 = vmatpush.bf16.msra.mxu0 0
    %930 = vmatpush.bf16.msra.mxu0 0
    %931 = vmatpush.bf16.msra.mxu0 0
    %932 = vmatpush.bf16.msra.mxu0 0
    %933 = vmatpush.bf16.msra.mxu0 0
    %934 = vmatpush.bf16.msra.mxu0 0
    %935 = vmatpush.bf16.msra.mxu0 %v880
    %936 = vmatmul.bf16.gmra.mxu0 %v885
    %v937 = vpop.f32.mrf.mxu0
    %v938 = vadd.f32 0.0, %v937
    %v939 = vpop.f32.mrf.mxu0
    %v940 = vadd.f32 0.0, %v939
    %941 = vmatmul.bf16.gmra.mxu0 %v888
    %v942 = vpop.f32.mrf.mxu0
    %v943 = vadd.f32 0.0, %v942
    %v944 = vpop.f32.mrf.mxu0
    %v945 = vadd.f32 0.0, %v944
    %946 = vdwg.mxu0
    %v947 = vadd.f32 %v842, %v900
    %v948 = vadd.f32 %v843, %v919
    %v949 = vadd.f32 %v844, %v938
    %v950 = vadd.f32 %v845, %v902
    %v951 = vadd.f32 %v846, %v921
    %v952 = vadd.f32 %v847, %v940
    %v953 = vadd.f32 %v848, %v905
    %v954 = vadd.f32 %v849, %v924
    %v955 = vadd.f32 %v850, %v943
    %v956 = vadd.f32 %v851, %v907
    %v957 = vadd.f32 %v852, %v926
    %v958 = vadd.f32 %v853, %v945
    %v959 = vld [vmem:[%s2] sm:$0xff]
    %v960 = vld [vmem:[%s2 + $0x8] sm:$0xff]
    %v961 = vld [vmem:[%s2 + $0x10] sm:$0xff]
    %v962 = vld [vmem:[%s2 + $0x18] sm:$0xff]
    %964 = vset.pattern.permute.xlu0 0
    %965 = vperm.xlu0 %964, %v959
    %v966 = vpop.permute.xlu0 %965
    %969 = vset.pattern.permute.xlu0 0
    %970 = vperm.xlu0 %969, %v960
    %v971 = vpop.permute.xlu0 %970
    %974 = vset.pattern.permute.xlu0 0
    %975 = vperm.xlu0 %974, %v961
    %v976 = vpop.permute.xlu0 %975
    %979 = vset.pattern.permute.xlu0 0
    %980 = vperm.xlu0 %979, %v962
    %v981 = vpop.permute.xlu0 %980
    %v983 = vadd.f32 %v947, %v966
    %v984 = vadd.f32 %v948, %v966
    %v985 = vadd.f32 %v949, %v966
    %v986 = vadd.f32 %v950, %v971
    %v987 = vadd.f32 %v951, %v971
    %v988 = vadd.f32 %v952, %v971
    %v989 = vadd.f32 %v953, %v976
    %v990 = vadd.f32 %v954, %v976
    %v991 = vadd.f32 %v955, %v976
    %v992 = vadd.f32 %v956, %v981
    %v993 = vadd.f32 %v957, %v981
    %v994 = vadd.f32 %v958, %v981
    %v995 = vmax.f32 %v983, 0.0
    %v996 = vmax.f32 %v984, 0.0
    %v997 = vmax.f32 %v985, 0.0
    %v998 = vmax.f32 %v986, 0.0
    %v999 = vmax.f32 %v987, 0.0
    %v1000 = vmax.f32 %v988, 0.0
    %v1001 = vmax.f32 %v989, 0.0
    %v1002 = vmax.f32 %v990, 0.0
    %v1003 = vmax.f32 %v991, 0.0
    %v1004 = vmax.f32 %v992, 0.0
    %v1005 = vmax.f32 %v993, 0.0
    %v1006 = vmax.f32 %v994, 0.0
    %v1007 = vpack.c.bf16 %v998, %v995
    %v1008 = vpack.c.bf16 %v999, %v996
    %v1009 = vpack.c.bf16 %v1000, %v997
    %v1010 = vpack.c.bf16 %v1004, %v1001
    %v1011 = vpack.c.bf16 %v1005, %v1002
    %v1012 = vpack.c.bf16 %v1006, %v1003
    %v1013 = vld [vmem:[%s3] sm:$0xf]
    %v1014 = vld [vmem:[%s3 + $0x4] sm:$0xf]
    %v1015 = vld [vmem:[%s4] sm:$0xff]
    %v1016 = vld [vmem:[%s4 + $0x8] sm:$0xff]
    %1018 = vset.pattern.permute.xlu0 0
    %1019 = vperm.xlu0 %1018, %v1015
    %v1020 = vpop.permute.xlu0 %1019
    %1023 = vset.pattern.permute.xlu0 0
    %1024 = vperm.xlu0 %1023, %v1016
    %v1025 = vpop.permute.xlu0 %1024
    %v1029 = vunpack.c.l.b16 %v1013
    %v1030 = vunpack.c.l.b16 %v1014
    %v1031 = vpack.c.b16 %v1030, %v1029
    %vm1032 = vcmask 261120
    %v1034 = vsel %vm1032, %v1031, 0
    %1036 = vmatpush.bf16.msra.mxu0 0
    %1037 = vmatpush.bf16.msra.mxu0 0
    %1038 = vmatpush.bf16.msra.mxu0 0
    %1039 = vmatpush.bf16.msra.mxu0 0
    %1040 = vmatpush.bf16.msra.mxu0 0
    %1041 = vmatpush.bf16.msra.mxu0 0
    %1042 = vmatpush.bf16.msra.mxu0 %v1010
    %1043 = vmatpush.bf16.msra.mxu0 %v1007
    %1044 = vmatmul.bf16.gmra.mxu0 %v1034
    %v1045 = vpop.f32.mrf.mxu0
    %v1046 = vadd.f32 %v1020, %v1045
    %v1047 = vpop.f32.mrf.mxu0
    %v1048 = vadd.f32 %v1025, %v1047
    %1049 = vdwg.mxu0
    %1050 = vmatpush.bf16.msra.mxu0 0
    %1051 = vmatpush.bf16.msra.mxu0 0
    %1052 = vmatpush.bf16.msra.mxu0 0
    %1053 = vmatpush.bf16.msra.mxu0 0
    %1054 = vmatpush.bf16.msra.mxu0 0
    %1055 = vmatpush.bf16.msra.mxu0 0
    %1056 = vmatpush.bf16.msra.mxu0 %v1011
    %1057 = vmatpush.bf16.msra.mxu0 %v1008
    %1058 = vmatmul.bf16.gmra.mxu0 %v1034
    %v1059 = vpop.f32.mrf.mxu0
    %v1060 = vadd.f32 %v1020, %v1059
    %v1061 = vpop.f32.mrf.mxu0
    %v1062 = vadd.f32 %v1025, %v1061
    %1063 = vdwg.mxu0
    %1064 = vmatpush.bf16.msra.mxu0 0
    %1065 = vmatpush.bf16.msra.mxu0 0
    %1066 = vmatpush.bf16.msra.mxu0 0
    %1067 = vmatpush.bf16.msra.mxu0 0
    %1068 = vmatpush.bf16.msra.mxu0 0
    %1069 = vmatpush.bf16.msra.mxu0 0
    %1070 = vmatpush.bf16.msra.mxu0 %v1012
    %1071 = vmatpush.bf16.msra.mxu0 %v1009
    %1072 = vmatmul.bf16.gmra.mxu0 %v1034
    %v1073 = vpop.f32.mrf.mxu0
    %v1074 = vadd.f32 %v1020, %v1073
    %v1075 = vpop.f32.mrf.mxu0
    %v1076 = vadd.f32 %v1025, %v1075
    %1077 = vdwg.mxu0
    %1086 = vrot.lane.b32.xlu0 %v22, 109
    %v1087 = vpop.permute.xlu0 %1086
    %1088 = vrot.lane.b32.xlu0 %v23, 109
    %v1089 = vpop.permute.xlu0 %1088
    %1090 = vrot.lane.b32.xlu0 %v24, 109
    %v1091 = vpop.permute.xlu0 %1090
    %1092 = vrot.lane.b32.xlu0 %v25, 109
    %v1093 = vpop.permute.xlu0 %1092
    %1094 = vrot.lane.b32.xlu0 %v26, 109
    %v1095 = vpop.permute.xlu0 %1094
    %1096 = vrot.lane.b32.xlu0 %v27, 109
    %v1097 = vpop.permute.xlu0 %1096
    %1098 = vrot.lane.b32.xlu0 %v28, 109
    %v1099 = vpop.permute.xlu0 %1098
    %1100 = vrot.lane.b32.xlu0 %v29, 109
    %v1101 = vpop.permute.xlu0 %1100
    %vm1102 = vcmask 891904
    %v1103 = vsel %vm1102, %v1087, %v1089
    %v1104 = vsel %vm1102, %v1089, %v1091
    %v1105 = vsel %vm1102, %v1091, %v1093
    %v1106 = vsel %vm1102, %v1095, %v1097
    %v1107 = vsel %vm1102, %v1097, %v1099
    %v1108 = vsel %vm1102, %v1099, %v1101
    %v1115 = vadd.f32 %v1046, %v1103
    %v1116 = vadd.f32 %v1060, %v1104
    %v1117 = vadd.f32 %v1074, %v1105
    %v1118 = vadd.f32 %v1048, %v1106
    %v1119 = vadd.f32 %v1062, %v1107
    %v1120 = vadd.f32 %v1076, %v1108
    %1121 = vst [vmem:[#allocation2] sm:$0xff] %v1115
    %1122 = vst [vmem:[#allocation2 + $0x8] sm:$0xff] %v1116
    %1123 = vst [vmem:[#allocation2 + $0x10] sm:$0xff] %v1117
    %1124 = vst [vmem:[#allocation2 + $0x18] sm:$0xff] %v1118
    %1125 = vst [vmem:[#allocation2 + $0x20] sm:$0xff] %v1119
    %1126 = vst [vmem:[#allocation2 + $0x28] sm:$0xff] %v1120
    %s1127 = scalar_lea.vmem %s0, 64
    %v1128 = vld [vmem:[%s1127] sm:$0xff]
    %v1129 = vld [vmem:[%s1127 + $0x8] sm:$0xff]
    %v1130 = vld [vmem:[%s1127 + $0x10] sm:$0xff]
    %v1131 = vld [vmem:[%s1127 + $0x18] sm:$0xff]
    %v1132 = vld [vmem:[%s1127 + $0x20] sm:$0xff]
    %v1133 = vld [vmem:[%s1127 + $0x28] sm:$0xff]
    %v1134 = vld [vmem:[%s1127 + $0x30] sm:$0xff]
    %v1135 = vld [vmem:[%s1127 + $0x38] sm:$0xff]
    %v1136 = vpack.c.bf16 %v1129, %v1128
    %v1137 = vpack.c.bf16 %v1131, %v1130
    %v1138 = vpack.c.bf16 %v1133, %v1132
    %v1139 = vpack.c.bf16 %v1135, %v1134
    %v1140 = vld [vmem:[%s1] sm:$0xf]
    %v1141 = vld [vmem:[%s1 + $0x4] sm:$0xf]
    %v1142 = vld [vmem:[%s1 + $0x8] sm:$0xf]
    %v1143 = vld [vmem:[%s1 + $0xc] sm:$0xf]
    %v1144 = vld [vmem:[%s38] sm:$0xf]
    %v1145 = vld [vmem:[%s38 + $0x4] sm:$0xf]
    %v1146 = vld [vmem:[%s38 + $0x8] sm:$0xf]
    %v1147 = vld [vmem:[%s38 + $0xc] sm:$0xf]
    %v1152 = vunpack.c.l.b16 %v1144
    %v1153 = vunpack.c.l.b16 %v1145
    %v1154 = vunpack.c.l.b16 %v1146
    %v1155 = vunpack.c.l.b16 %v1147
    %v1156 = vpack.c.b16 %v1153, %v1152
    %v1157 = vpack.c.b16 %v1155, %v1154
    %v1162 = vunpack.c.l.b16 %v1136
    %v1163 = vunpack.c.h.b16 %v1136
    %v1164 = vunpack.c.l.b16 %v1137
    %v1165 = vunpack.c.h.b16 %v1137
    %v1166 = vunpack.c.l.b16 %v1138
    %v1167 = vunpack.c.h.b16 %v1138
    %v1168 = vunpack.c.l.b16 %v1139
    %v1169 = vunpack.c.h.b16 %v1139
    %v1170 = vpack.c.b16 %v1166, %v1162
    %v1171 = vpack.c.b16 %v1167, %v1163
    %v1172 = vpack.c.b16 %v1168, %v1164
    %v1173 = vpack.c.b16 %v1169, %v1165
    %1174 = vrot.lane.b32.xlu0 %v1170, 127
    %v1175 = vpop.permute.xlu0 %1174
    %1176 = vrot.lane.b32.xlu0 %v1171, 127
    %v1177 = vpop.permute.xlu0 %1176
    %1178 = vrot.lane.b32.xlu0 %v1172, 127
    %v1179 = vpop.permute.xlu0 %1178
    %1180 = vrot.lane.b32.xlu0 %v1173, 127
    %v1181 = vpop.permute.xlu0 %1180
    %v1182 = vsel %vm77, %v1175, %v1177
    %v1183 = vsel %vm77, %v1177, %v1179
    %v1184 = vsel %vm77, %v1179, %v1181
    %v1189 = vsel %vm84, %v1156, 0
    %v1192 = vsel %vm84, %v1157, 0
    %1194 = vmatpush.bf16.msra.mxu0 0
    %1195 = vmatpush.bf16.msra.mxu0 0
    %1196 = vmatpush.bf16.msra.mxu0 0
    %1197 = vmatpush.bf16.msra.mxu0 0
    %1198 = vmatpush.bf16.msra.mxu0 0
    %1199 = vmatpush.bf16.msra.mxu0 0
    %1200 = vmatpush.bf16.msra.mxu0 0
    %1201 = vmatpush.bf16.msra.mxu0 %v1182
    %1202 = vmatmul.bf16.gmra.mxu0 %v1189
    %v1203 = vpop.f32.mrf.mxu0
    %v1204 = vadd.f32 0.0, %v1203
    %v1205 = vpop.f32.mrf.mxu0
    %v1206 = vadd.f32 0.0, %v1205
    %1207 = vmatmul.bf16.gmra.mxu0 %v1192
    %v1208 = vpop.f32.mrf.mxu0
    %v1209 = vadd.f32 0.0, %v1208
    %v1210 = vpop.f32.mrf.mxu0
    %v1211 = vadd.f32 0.0, %v1210
    %1212 = vdwg.mxu0
    %1213 = vmatpush.bf16.msra.mxu0 0
    %1214 = vmatpush.bf16.msra.mxu0 0
    %1215 = vmatpush.bf16.msra.mxu0 0
    %1216 = vmatpush.bf16.msra.mxu0 0
    %1217 = vmatpush.bf16.msra.mxu0 0
    %1218 = vmatpush.bf16.msra.mxu0 0
    %1219 = vmatpush.bf16.msra.mxu0 0
    %1220 = vmatpush.bf16.msra.mxu0 %v1183
    %1221 = vmatmul.bf16.gmra.mxu0 %v1189
    %v1222 = vpop.f32.mrf.mxu0
    %v1223 = vadd.f32 0.0, %v1222
    %v1224 = vpop.f32.mrf.mxu0
    %v1225 = vadd.f32 0.0, %v1224
    %1226 = vmatmul.bf16.gmra.mxu0 %v1192
    %v1227 = vpop.f32.mrf.mxu0
    %v1228 = vadd.f32 0.0, %v1227
    %v1229 = vpop.f32.mrf.mxu0
    %v1230 = vadd.f32 0.0, %v1229
    %1231 = vdwg.mxu0
    %1232 = vmatpush.bf16.msra.mxu0 0
    %1233 = vmatpush.bf16.msra.mxu0 0
    %1234 = vmatpush.bf16.msra.mxu0 0
    %1235 = vmatpush.bf16.msra.mxu0 0
    %1236 = vmatpush.bf16.msra.mxu0 0
    %1237 = vmatpush.bf16.msra.mxu0 0
    %1238 = vmatpush.bf16.msra.mxu0 0
    %1239 = vmatpush.bf16.msra.mxu0 %v1184
    %1240 = vmatmul.bf16.gmra.mxu0 %v1189
    %v1241 = vpop.f32.mrf.mxu0
    %v1242 = vadd.f32 0.0, %v1241
    %v1243 = vpop.f32.mrf.mxu0
    %v1244 = vadd.f32 0.0, %v1243
    %1245 = vmatmul.bf16.gmra.mxu0 %v1192
    %v1246 = vpop.f32.mrf.mxu0
    %v1247 = vadd.f32 0.0, %v1246
    %v1248 = vpop.f32.mrf.mxu0
    %v1249 = vadd.f32 0.0, %v1248
    %1250 = vdwg.mxu0
    %v1255 = vunpack.c.l.b16 %v1140
    %v1256 = vunpack.c.l.b16 %v1141
    %v1257 = vunpack.c.l.b16 %v1142
    %v1258 = vunpack.c.l.b16 %v1143
    %v1259 = vpack.c.b16 %v1256, %v1255
    %v1260 = vpack.c.b16 %v1258, %v1257
    %v1265 = vsel %vm84, %v1259, 0
    %v1268 = vsel %vm84, %v1260, 0
    %1270 = vmatpush.bf16.msra.mxu0 0
    %1271 = vmatpush.bf16.msra.mxu0 0
    %1272 = vmatpush.bf16.msra.mxu0 0
    %1273 = vmatpush.bf16.msra.mxu0 0
    %1274 = vmatpush.bf16.msra.mxu0 0
    %1275 = vmatpush.bf16.msra.mxu0 0
    %1276 = vmatpush.bf16.msra.mxu0 0
    %1277 = vmatpush.bf16.msra.mxu0 %v1170
    %1278 = vmatmul.bf16.gmra.mxu0 %v1265
    %v1279 = vpop.f32.mrf.mxu0
    %v1280 = vadd.f32 %v1204, %v1279
    %v1281 = vpop.f32.mrf.mxu0
    %v1282 = vadd.f32 %v1206, %v1281
    %1283 = vmatmul.bf16.gmra.mxu0 %v1268
    %v1284 = vpop.f32.mrf.mxu0
    %v1285 = vadd.f32 %v1209, %v1284
    %v1286 = vpop.f32.mrf.mxu0
    %v1287 = vadd.f32 %v1211, %v1286
    %1288 = vdwg.mxu0
    %1289 = vmatpush.bf16.msra.mxu0 0
    %1290 = vmatpush.bf16.msra.mxu0 0
    %1291 = vmatpush.bf16.msra.mxu0 0
    %1292 = vmatpush.bf16.msra.mxu0 0
    %1293 = vmatpush.bf16.msra.mxu0 0
    %1294 = vmatpush.bf16.msra.mxu0 0
    %1295 = vmatpush.bf16.msra.mxu0 0
    %1296 = vmatpush.bf16.msra.mxu0 %v1171
    %1297 = vmatmul.bf16.gmra.mxu0 %v1265
    %v1298 = vpop.f32.mrf.mxu0
    %v1299 = vadd.f32 %v1223, %v1298
    %v1300 = vpop.f32.mrf.mxu0
    %v1301 = vadd.f32 %v1225, %v1300
    %1302 = vmatmul.bf16.gmra.mxu0 %v1268
    %v1303 = vpop.f32.mrf.mxu0
    %v1304 = vadd.f32 %v1228, %v1303
    %v1305 = vpop.f32.mrf.mxu0
    %v1306 = vadd.f32 %v1230, %v1305
    %1307 = vdwg.mxu0
    %1308 = vmatpush.bf16.msra.mxu0 0
    %1309 = vmatpush.bf16.msra.mxu0 0
    %1310 = vmatpush.bf16.msra.mxu0 0
    %1311 = vmatpush.bf16.msra.mxu0 0
    %1312 = vmatpush.bf16.msra.mxu0 0
    %1313 = vmatpush.bf16.msra.mxu0 0
    %1314 = vmatpush.bf16.msra.mxu0 0
    %1315 = vmatpush.bf16.msra.mxu0 %v1172
    %1316 = vmatmul.bf16.gmra.mxu0 %v1265
    %v1317 = vpop.f32.mrf.mxu0
    %v1318 = vadd.f32 %v1242, %v1317
    %v1319 = vpop.f32.mrf.mxu0
    %v1320 = vadd.f32 %v1244, %v1319
    %1321 = vmatmul.bf16.gmra.mxu0 %v1268
    %v1322 = vpop.f32.mrf.mxu0
    %v1323 = vadd.f32 %v1247, %v1322
    %v1324 = vpop.f32.mrf.mxu0
    %v1325 = vadd.f32 %v1249, %v1324
    %1326 = vdwg.mxu0
    %v1327 = vld [vmem:[%s224] sm:$0xf]
    %v1328 = vld [vmem:[%s224 + $0x4] sm:$0xf]
    %v1329 = vld [vmem:[%s224 + $0x8] sm:$0xf]
    %v1330 = vld [vmem:[%s224 + $0xc] sm:$0xf]
    %v1335 = vunpack.c.l.b16 %v1327
    %v1336 = vunpack.c.l.b16 %v1328
    %v1337 = vunpack.c.l.b16 %v1329
    %v1338 = vunpack.c.l.b16 %v1330
    %v1339 = vpack.c.b16 %v1336, %v1335
    %v1340 = vpack.c.b16 %v1338, %v1337
    %1341 = vrot.lane.b32.xlu0 %v1170, 126
    %v1342 = vpop.permute.xlu0 %1341
    %1343 = vrot.lane.b32.xlu0 %v1171, 126
    %v1344 = vpop.permute.xlu0 %1343
    %1345 = vrot.lane.b32.xlu0 %v1172, 126
    %v1346 = vpop.permute.xlu0 %1345
    %1347 = vrot.lane.b32.xlu0 %v1173, 126
    %v1348 = vpop.permute.xlu0 %1347
    %v1349 = vsel %vm247, %v1342, %v1344
    %v1350 = vsel %vm247, %v1344, %v1346
    %v1351 = vsel %vm247, %v1346, %v1348
    %v1356 = vsel %vm84, %v1339, 0
    %v1359 = vsel %vm84, %v1340, 0
    %1361 = vmatpush.bf16.msra.mxu0 0
    %1362 = vmatpush.bf16.msra.mxu0 0
    %1363 = vmatpush.bf16.msra.mxu0 0
    %1364 = vmatpush.bf16.msra.mxu0 0
    %1365 = vmatpush.bf16.msra.mxu0 0
    %1366 = vmatpush.bf16.msra.mxu0 0
    %1367 = vmatpush.bf16.msra.mxu0 0
    %1368 = vmatpush.bf16.msra.mxu0 %v1349
    %1369 = vmatmul.bf16.gmra.mxu0 %v1356
    %v1370 = vpop.f32.mrf.mxu0
    %v1371 = vadd.f32 0.0, %v1370
    %v1372 = vpop.f32.mrf.mxu0
    %v1373 = vadd.f32 0.0, %v1372
    %1374 = vmatmul.bf16.gmra.mxu0 %v1359
    %v1375 = vpop.f32.mrf.mxu0
    %v1376 = vadd.f32 0.0, %v1375
    %v1377 = vpop.f32.mrf.mxu0
    %v1378 = vadd.f32 0.0, %v1377
    %1379 = vdwg.mxu0
    %1380 = vmatpush.bf16.msra.mxu0 0
    %1381 = vmatpush.bf16.msra.mxu0 0
    %1382 = vmatpush.bf16.msra.mxu0 0
    %1383 = vmatpush.bf16.msra.mxu0 0
    %1384 = vmatpush.bf16.msra.mxu0 0
    %1385 = vmatpush.bf16.msra.mxu0 0
    %1386 = vmatpush.bf16.msra.mxu0 0
    %1387 = vmatpush.bf16.msra.mxu0 %v1350
    %1388 = vmatmul.bf16.gmra.mxu0 %v1356
    %v1389 = vpop.f32.mrf.mxu0
    %v1390 = vadd.f32 0.0, %v1389
    %v1391 = vpop.f32.mrf.mxu0
    %v1392 = vadd.f32 0.0, %v1391
    %1393 = vmatmul.bf16.gmra.mxu0 %v1359
    %v1394 = vpop.f32.mrf.mxu0
    %v1395 = vadd.f32 0.0, %v1394
    %v1396 = vpop.f32.mrf.mxu0
    %v1397 = vadd.f32 0.0, %v1396
    %1398 = vdwg.mxu0
    %1399 = vmatpush.bf16.msra.mxu0 0
    %1400 = vmatpush.bf16.msra.mxu0 0
    %1401 = vmatpush.bf16.msra.mxu0 0
    %1402 = vmatpush.bf16.msra.mxu0 0
    %1403 = vmatpush.bf16.msra.mxu0 0
    %1404 = vmatpush.bf16.msra.mxu0 0
    %1405 = vmatpush.bf16.msra.mxu0 0
    %1406 = vmatpush.bf16.msra.mxu0 %v1351
    %1407 = vmatmul.bf16.gmra.mxu0 %v1356
    %v1408 = vpop.f32.mrf.mxu0
    %v1409 = vadd.f32 0.0, %v1408
    %v1410 = vpop.f32.mrf.mxu0
    %v1411 = vadd.f32 0.0, %v1410
    %1412 = vmatmul.bf16.gmra.mxu0 %v1359
    %v1413 = vpop.f32.mrf.mxu0
    %v1414 = vadd.f32 0.0, %v1413
    %v1415 = vpop.f32.mrf.mxu0
    %v1416 = vadd.f32 0.0, %v1415
    %1417 = vdwg.mxu0
    %v1418 = vadd.f32 %v1280, %v1371
    %v1419 = vadd.f32 %v1299, %v1390
    %v1420 = vadd.f32 %v1318, %v1409
    %v1421 = vadd.f32 %v1282, %v1373
    %v1422 = vadd.f32 %v1301, %v1392
    %v1423 = vadd.f32 %v1320, %v1411
    %v1424 = vadd.f32 %v1285, %v1376
    %v1425 = vadd.f32 %v1304, %v1395
    %v1426 = vadd.f32 %v1323, %v1414
    %v1427 = vadd.f32 %v1287, %v1378
    %v1428 = vadd.f32 %v1306, %v1397
    %v1429 = vadd.f32 %v1325, %v1416
    %v1430 = vld [vmem:[%s329] sm:$0xf]
    %v1431 = vld [vmem:[%s329 + $0x4] sm:$0xf]
    %v1432 = vld [vmem:[%s329 + $0x8] sm:$0xf]
    %v1433 = vld [vmem:[%s329 + $0xc] sm:$0xf]
    %v1438 = vunpack.c.l.b16 %v1430
    %v1439 = vunpack.c.l.b16 %v1431
    %v1440 = vunpack.c.l.b16 %v1432
    %v1441 = vunpack.c.l.b16 %v1433
    %v1442 = vpack.c.b16 %v1439, %v1438
    %v1443 = vpack.c.b16 %v1441, %v1440
    %1444 = vrot.lane.b32.xlu0 %v1170, 110
    %v1445 = vpop.permute.xlu0 %1444
    %1446 = vrot.lane.b32.xlu0 %v1171, 110
    %v1447 = vpop.permute.xlu0 %1446
    %1448 = vrot.lane.b32.xlu0 %v1172, 110
    %v1449 = vpop.permute.xlu0 %1448
    %1450 = vrot.lane.b32.xlu0 %v1173, 110
    %v1451 = vpop.permute.xlu0 %1450
    %v1452 = vsel %vm352, %v1445, %v1447
    %v1453 = vsel %vm352, %v1447, %v1449
    %v1454 = vsel %vm352, %v1449, %v1451
    %v1459 = vsel %vm84, %v1442, 0
    %v1462 = vsel %vm84, %v1443, 0
    %1464 = vmatpush.bf16.msra.mxu0 0
    %1465 = vmatpush.bf16.msra.mxu0 0
    %1466 = vmatpush.bf16.msra.mxu0 0
    %1467 = vmatpush.bf16.msra.mxu0 0
    %1468 = vmatpush.bf16.msra.mxu0 0
    %1469 = vmatpush.bf16.msra.mxu0 0
    %1470 = vmatpush.bf16.msra.mxu0 0
    %1471 = vmatpush.bf16.msra.mxu0 %v1452
    %1472 = vmatmul.bf16.gmra.mxu0 %v1459
    %v1473 = vpop.f32.mrf.mxu0
    %v1474 = vadd.f32 0.0, %v1473
    %v1475 = vpop.f32.mrf.mxu0
    %v1476 = vadd.f32 0.0, %v1475
    %1477 = vmatmul.bf16.gmra.mxu0 %v1462
    %v1478 = vpop.f32.mrf.mxu0
    %v1479 = vadd.f32 0.0, %v1478
    %v1480 = vpop.f32.mrf.mxu0
    %v1481 = vadd.f32 0.0, %v1480
    %1482 = vdwg.mxu0
    %1483 = vmatpush.bf16.msra.mxu0 0
    %1484 = vmatpush.bf16.msra.mxu0 0
    %1485 = vmatpush.bf16.msra.mxu0 0
    %1486 = vmatpush.bf16.msra.mxu0 0
    %1487 = vmatpush.bf16.msra.mxu0 0
    %1488 = vmatpush.bf16.msra.mxu0 0
    %1489 = vmatpush.bf16.msra.mxu0 0
    %1490 = vmatpush.bf16.msra.mxu0 %v1453
    %1491 = vmatmul.bf16.gmra.mxu0 %v1459
    %v1492 = vpop.f32.mrf.mxu0
    %v1493 = vadd.f32 0.0, %v1492
    %v1494 = vpop.f32.mrf.mxu0
    %v1495 = vadd.f32 0.0, %v1494
    %1496 = vmatmul.bf16.gmra.mxu0 %v1462
    %v1497 = vpop.f32.mrf.mxu0
    %v1498 = vadd.f32 0.0, %v1497
    %v1499 = vpop.f32.mrf.mxu0
    %v1500 = vadd.f32 0.0, %v1499
    %1501 = vdwg.mxu0
    %1502 = vmatpush.bf16.msra.mxu0 0
    %1503 = vmatpush.bf16.msra.mxu0 0
    %1504 = vmatpush.bf16.msra.mxu0 0
    %1505 = vmatpush.bf16.msra.mxu0 0
    %1506 = vmatpush.bf16.msra.mxu0 0
    %1507 = vmatpush.bf16.msra.mxu0 0
    %1508 = vmatpush.bf16.msra.mxu0 0
    %1509 = vmatpush.bf16.msra.mxu0 %v1454
    %1510 = vmatmul.bf16.gmra.mxu0 %v1459
    %v1511 = vpop.f32.mrf.mxu0
    %v1512 = vadd.f32 0.0, %v1511
    %v1513 = vpop.f32.mrf.mxu0
    %v1514 = vadd.f32 0.0, %v1513
    %1515 = vmatmul.bf16.gmra.mxu0 %v1462
    %v1516 = vpop.f32.mrf.mxu0
    %v1517 = vadd.f32 0.0, %v1516
    %v1518 = vpop.f32.mrf.mxu0
    %v1519 = vadd.f32 0.0, %v1518
    %1520 = vdwg.mxu0
    %v1521 = vadd.f32 %v1418, %v1474
    %v1522 = vadd.f32 %v1419, %v1493
    %v1523 = vadd.f32 %v1420, %v1512
    %v1524 = vadd.f32 %v1421, %v1476
    %v1525 = vadd.f32 %v1422, %v1495
    %v1526 = vadd.f32 %v1423, %v1514
    %v1527 = vadd.f32 %v1424, %v1479
    %v1528 = vadd.f32 %v1425, %v1498
    %v1529 = vadd.f32 %v1426, %v1517
    %v1530 = vadd.f32 %v1427, %v1481
    %v1531 = vadd.f32 %v1428, %v1500
    %v1532 = vadd.f32 %v1429, %v1519
    %v1533 = vld [vmem:[%s434] sm:$0xf]
    %v1534 = vld [vmem:[%s434 + $0x4] sm:$0xf]
    %v1535 = vld [vmem:[%s434 + $0x8] sm:$0xf]
    %v1536 = vld [vmem:[%s434 + $0xc] sm:$0xf]
    %v1541 = vunpack.c.l.b16 %v1533
    %v1542 = vunpack.c.l.b16 %v1534
    %v1543 = vunpack.c.l.b16 %v1535
    %v1544 = vunpack.c.l.b16 %v1536
    %v1545 = vpack.c.b16 %v1542, %v1541
    %v1546 = vpack.c.b16 %v1544, %v1543
    %1547 = vrot.lane.b32.xlu0 %v1170, 109
    %v1548 = vpop.permute.xlu0 %1547
    %1549 = vrot.lane.b32.xlu0 %v1171, 109
    %v1550 = vpop.permute.xlu0 %1549
    %1551 = vrot.lane.b32.xlu0 %v1172, 109
    %v1552 = vpop.permute.xlu0 %1551
    %1553 = vrot.lane.b32.xlu0 %v1173, 109
    %v1554 = vpop.permute.xlu0 %1553
    %v1555 = vsel %vm457, %v1548, %v1550
    %v1556 = vsel %vm457, %v1550, %v1552
    %v1557 = vsel %vm457, %v1552, %v1554
    %v1562 = vsel %vm84, %v1545, 0
    %v1565 = vsel %vm84, %v1546, 0
    %1567 = vmatpush.bf16.msra.mxu0 0
    %1568 = vmatpush.bf16.msra.mxu0 0
    %1569 = vmatpush.bf16.msra.mxu0 0
    %1570 = vmatpush.bf16.msra.mxu0 0
    %1571 = vmatpush.bf16.msra.mxu0 0
    %1572 = vmatpush.bf16.msra.mxu0 0
    %1573 = vmatpush.bf16.msra.mxu0 0
    %1574 = vmatpush.bf16.msra.mxu0 %v1555
    %1575 = vmatmul.bf16.gmra.mxu0 %v1562
    %v1576 = vpop.f32.mrf.mxu0
    %v1577 = vadd.f32 0.0, %v1576
    %v1578 = vpop.f32.mrf.mxu0
    %v1579 = vadd.f32 0.0, %v1578
    %1580 = vmatmul.bf16.gmra.mxu0 %v1565
    %v1581 = vpop.f32.mrf.mxu0
    %v1582 = vadd.f32 0.0, %v1581
    %v1583 = vpop.f32.mrf.mxu0
    %v1584 = vadd.f32 0.0, %v1583
    %1585 = vdwg.mxu0
    %1586 = vmatpush.bf16.msra.mxu0 0
    %1587 = vmatpush.bf16.msra.mxu0 0
    %1588 = vmatpush.bf16.msra.mxu0 0
    %1589 = vmatpush.bf16.msra.mxu0 0
    %1590 = vmatpush.bf16.msra.mxu0 0
    %1591 = vmatpush.bf16.msra.mxu0 0
    %1592 = vmatpush.bf16.msra.mxu0 0
    %1593 = vmatpush.bf16.msra.mxu0 %v1556
    %1594 = vmatmul.bf16.gmra.mxu0 %v1562
    %v1595 = vpop.f32.mrf.mxu0
    %v1596 = vadd.f32 0.0, %v1595
    %v1597 = vpop.f32.mrf.mxu0
    %v1598 = vadd.f32 0.0, %v1597
    %1599 = vmatmul.bf16.gmra.mxu0 %v1565
    %v1600 = vpop.f32.mrf.mxu0
    %v1601 = vadd.f32 0.0, %v1600
    %v1602 = vpop.f32.mrf.mxu0
    %v1603 = vadd.f32 0.0, %v1602
    %1604 = vdwg.mxu0
    %1605 = vmatpush.bf16.msra.mxu0 0
    %1606 = vmatpush.bf16.msra.mxu0 0
    %1607 = vmatpush.bf16.msra.mxu0 0
    %1608 = vmatpush.bf16.msra.mxu0 0
    %1609 = vmatpush.bf16.msra.mxu0 0
    %1610 = vmatpush.bf16.msra.mxu0 0
    %1611 = vmatpush.bf16.msra.mxu0 0
    %1612 = vmatpush.bf16.msra.mxu0 %v1557
    %1613 = vmatmul.bf16.gmra.mxu0 %v1562
    %v1614 = vpop.f32.mrf.mxu0
    %v1615 = vadd.f32 0.0, %v1614
    %v1616 = vpop.f32.mrf.mxu0
    %v1617 = vadd.f32 0.0, %v1616
    %1618 = vmatmul.bf16.gmra.mxu0 %v1565
    %v1619 = vpop.f32.mrf.mxu0
    %v1620 = vadd.f32 0.0, %v1619
    %v1621 = vpop.f32.mrf.mxu0
    %v1622 = vadd.f32 0.0, %v1621
    %1623 = vdwg.mxu0
    %v1624 = vadd.f32 %v1521, %v1577
    %v1625 = vadd.f32 %v1522, %v1596
    %v1626 = vadd.f32 %v1523, %v1615
    %v1627 = vadd.f32 %v1524, %v1579
    %v1628 = vadd.f32 %v1525, %v1598
    %v1629 = vadd.f32 %v1526, %v1617
    %v1630 = vadd.f32 %v1527, %v1582
    %v1631 = vadd.f32 %v1528, %v1601
    %v1632 = vadd.f32 %v1529, %v1620
    %v1633 = vadd.f32 %v1530, %v1584
    %v1634 = vadd.f32 %v1531, %v1603
    %v1635 = vadd.f32 %v1532, %v1622
    %v1636 = vld [vmem:[%s539] sm:$0xf]
    %v1637 = vld [vmem:[%s539 + $0x4] sm:$0xf]
    %v1638 = vld [vmem:[%s539 + $0x8] sm:$0xf]
    %v1639 = vld [vmem:[%s539 + $0xc] sm:$0xf]
    %v1644 = vunpack.c.l.b16 %v1636
    %v1645 = vunpack.c.l.b16 %v1637
    %v1646 = vunpack.c.l.b16 %v1638
    %v1647 = vunpack.c.l.b16 %v1639
    %v1648 = vpack.c.b16 %v1645, %v1644
    %v1649 = vpack.c.b16 %v1647, %v1646
    %1650 = vrot.lane.b32.xlu0 %v1170, 108
    %v1651 = vpop.permute.xlu0 %1650
    %1652 = vrot.lane.b32.xlu0 %v1171, 108
    %v1653 = vpop.permute.xlu0 %1652
    %1654 = vrot.lane.b32.xlu0 %v1172, 108
    %v1655 = vpop.permute.xlu0 %1654
    %1656 = vrot.lane.b32.xlu0 %v1173, 108
    %v1657 = vpop.permute.xlu0 %1656
    %v1658 = vsel %vm562, %v1651, %v1653
    %v1659 = vsel %vm562, %v1653, %v1655
    %v1660 = vsel %vm562, %v1655, %v1657
    %v1665 = vsel %vm84, %v1648, 0
    %v1668 = vsel %vm84, %v1649, 0
    %1670 = vmatpush.bf16.msra.mxu0 0
    %1671 = vmatpush.bf16.msra.mxu0 0
    %1672 = vmatpush.bf16.msra.mxu0 0
    %1673 = vmatpush.bf16.msra.mxu0 0
    %1674 = vmatpush.bf16.msra.mxu0 0
    %1675 = vmatpush.bf16.msra.mxu0 0
    %1676 = vmatpush.bf16.msra.mxu0 0
    %1677 = vmatpush.bf16.msra.mxu0 %v1658
    %1678 = vmatmul.bf16.gmra.mxu0 %v1665
    %v1679 = vpop.f32.mrf.mxu0
    %v1680 = vadd.f32 0.0, %v1679
    %v1681 = vpop.f32.mrf.mxu0
    %v1682 = vadd.f32 0.0, %v1681
    %1683 = vmatmul.bf16.gmra.mxu0 %v1668
    %v1684 = vpop.f32.mrf.mxu0
    %v1685 = vadd.f32 0.0, %v1684
    %v1686 = vpop.f32.mrf.mxu0
    %v1687 = vadd.f32 0.0, %v1686
    %1688 = vdwg.mxu0
    %1689 = vmatpush.bf16.msra.mxu0 0
    %1690 = vmatpush.bf16.msra.mxu0 0
    %1691 = vmatpush.bf16.msra.mxu0 0
    %1692 = vmatpush.bf16.msra.mxu0 0
    %1693 = vmatpush.bf16.msra.mxu0 0
    %1694 = vmatpush.bf16.msra.mxu0 0
    %1695 = vmatpush.bf16.msra.mxu0 0
    %1696 = vmatpush.bf16.msra.mxu0 %v1659
    %1697 = vmatmul.bf16.gmra.mxu0 %v1665
    %v1698 = vpop.f32.mrf.mxu0
    %v1699 = vadd.f32 0.0, %v1698
    %v1700 = vpop.f32.mrf.mxu0
    %v1701 = vadd.f32 0.0, %v1700
    %1702 = vmatmul.bf16.gmra.mxu0 %v1668
    %v1703 = vpop.f32.mrf.mxu0
    %v1704 = vadd.f32 0.0, %v1703
    %v1705 = vpop.f32.mrf.mxu0
    %v1706 = vadd.f32 0.0, %v1705
    %1707 = vdwg.mxu0
    %1708 = vmatpush.bf16.msra.mxu0 0
    %1709 = vmatpush.bf16.msra.mxu0 0
    %1710 = vmatpush.bf16.msra.mxu0 0
    %1711 = vmatpush.bf16.msra.mxu0 0
    %1712 = vmatpush.bf16.msra.mxu0 0
    %1713 = vmatpush.bf16.msra.mxu0 0
    %1714 = vmatpush.bf16.msra.mxu0 0
    %1715 = vmatpush.bf16.msra.mxu0 %v1660
    %1716 = vmatmul.bf16.gmra.mxu0 %v1665
    %v1717 = vpop.f32.mrf.mxu0
    %v1718 = vadd.f32 0.0, %v1717
    %v1719 = vpop.f32.mrf.mxu0
    %v1720 = vadd.f32 0.0, %v1719
    %1721 = vmatmul.bf16.gmra.mxu0 %v1668
    %v1722 = vpop.f32.mrf.mxu0
    %v1723 = vadd.f32 0.0, %v1722
    %v1724 = vpop.f32.mrf.mxu0
    %v1725 = vadd.f32 0.0, %v1724
    %1726 = vdwg.mxu0
    %v1727 = vadd.f32 %v1624, %v1680
    %v1728 = vadd.f32 %v1625, %v1699
    %v1729 = vadd.f32 %v1626, %v1718
    %v1730 = vadd.f32 %v1627, %v1682
    %v1731 = vadd.f32 %v1628, %v1701
    %v1732 = vadd.f32 %v1629, %v1720
    %v1733 = vadd.f32 %v1630, %v1685
    %v1734 = vadd.f32 %v1631, %v1704
    %v1735 = vadd.f32 %v1632, %v1723
    %v1736 = vadd.f32 %v1633, %v1687
    %v1737 = vadd.f32 %v1634, %v1706
    %v1738 = vadd.f32 %v1635, %v1725
    %v1739 = vld [vmem:[%s644] sm:$0xf]
    %v1740 = vld [vmem:[%s644 + $0x4] sm:$0xf]
    %v1741 = vld [vmem:[%s644 + $0x8] sm:$0xf]
    %v1742 = vld [vmem:[%s644 + $0xc] sm:$0xf]
    %v1747 = vunpack.c.l.b16 %v1739
    %v1748 = vunpack.c.l.b16 %v1740
    %v1749 = vunpack.c.l.b16 %v1741
    %v1750 = vunpack.c.l.b16 %v1742
    %v1751 = vpack.c.b16 %v1748, %v1747
    %v1752 = vpack.c.b16 %v1750, %v1749
    %1753 = vrot.lane.b32.xlu0 %v1170, 92
    %v1754 = vpop.permute.xlu0 %1753
    %1755 = vrot.lane.b32.xlu0 %v1171, 92
    %v1756 = vpop.permute.xlu0 %1755
    %1757 = vrot.lane.b32.xlu0 %v1172, 92
    %v1758 = vpop.permute.xlu0 %1757
    %1759 = vrot.lane.b32.xlu0 %v1173, 92
    %v1760 = vpop.permute.xlu0 %1759
    %v1761 = vsel %vm667, %v1754, %v1756
    %v1762 = vsel %vm667, %v1756, %v1758
    %v1763 = vsel %vm667, %v1758, %v1760
    %v1768 = vsel %vm84, %v1751, 0
    %v1771 = vsel %vm84, %v1752, 0
    %1773 = vmatpush.bf16.msra.mxu0 0
    %1774 = vmatpush.bf16.msra.mxu0 0
    %1775 = vmatpush.bf16.msra.mxu0 0
    %1776 = vmatpush.bf16.msra.mxu0 0
    %1777 = vmatpush.bf16.msra.mxu0 0
    %1778 = vmatpush.bf16.msra.mxu0 0
    %1779 = vmatpush.bf16.msra.mxu0 0
    %1780 = vmatpush.bf16.msra.mxu0 %v1761
    %1781 = vmatmul.bf16.gmra.mxu0 %v1768
    %v1782 = vpop.f32.mrf.mxu0
    %v1783 = vadd.f32 0.0, %v1782
    %v1784 = vpop.f32.mrf.mxu0
    %v1785 = vadd.f32 0.0, %v1784
    %1786 = vmatmul.bf16.gmra.mxu0 %v1771
    %v1787 = vpop.f32.mrf.mxu0
    %v1788 = vadd.f32 0.0, %v1787
    %v1789 = vpop.f32.mrf.mxu0
    %v1790 = vadd.f32 0.0, %v1789
    %1791 = vdwg.mxu0
    %1792 = vmatpush.bf16.msra.mxu0 0
    %1793 = vmatpush.bf16.msra.mxu0 0
    %1794 = vmatpush.bf16.msra.mxu0 0
    %1795 = vmatpush.bf16.msra.mxu0 0
    %1796 = vmatpush.bf16.msra.mxu0 0
    %1797 = vmatpush.bf16.msra.mxu0 0
    %1798 = vmatpush.bf16.msra.mxu0 0
    %1799 = vmatpush.bf16.msra.mxu0 %v1762
    %1800 = vmatmul.bf16.gmra.mxu0 %v1768
    %v1801 = vpop.f32.mrf.mxu0
    %v1802 = vadd.f32 0.0, %v1801
    %v1803 = vpop.f32.mrf.mxu0
    %v1804 = vadd.f32 0.0, %v1803
    %1805 = vmatmul.bf16.gmra.mxu0 %v1771
    %v1806 = vpop.f32.mrf.mxu0
    %v1807 = vadd.f32 0.0, %v1806
    %v1808 = vpop.f32.mrf.mxu0
    %v1809 = vadd.f32 0.0, %v1808
    %1810 = vdwg.mxu0
    %1811 = vmatpush.bf16.msra.mxu0 0
    %1812 = vmatpush.bf16.msra.mxu0 0
    %1813 = vmatpush.bf16.msra.mxu0 0
    %1814 = vmatpush.bf16.msra.mxu0 0
    %1815 = vmatpush.bf16.msra.mxu0 0
    %1816 = vmatpush.bf16.msra.mxu0 0
    %1817 = vmatpush.bf16.msra.mxu0 0
    %1818 = vmatpush.bf16.msra.mxu0 %v1763
    %1819 = vmatmul.bf16.gmra.mxu0 %v1768
    %v1820 = vpop.f32.mrf.mxu0
    %v1821 = vadd.f32 0.0, %v1820
    %v1822 = vpop.f32.mrf.mxu0
    %v1823 = vadd.f32 0.0, %v1822
    %1824 = vmatmul.bf16.gmra.mxu0 %v1771
    %v1825 = vpop.f32.mrf.mxu0
    %v1826 = vadd.f32 0.0, %v1825
    %v1827 = vpop.f32.mrf.mxu0
    %v1828 = vadd.f32 0.0, %v1827
    %1829 = vdwg.mxu0
    %v1830 = vadd.f32 %v1727, %v1783
    %v1831 = vadd.f32 %v1728, %v1802
    %v1832 = vadd.f32 %v1729, %v1821
    %v1833 = vadd.f32 %v1730, %v1785
    %v1834 = vadd.f32 %v1731, %v1804
    %v1835 = vadd.f32 %v1732, %v1823
    %v1836 = vadd.f32 %v1733, %v1788
    %v1837 = vadd.f32 %v1734, %v1807
    %v1838 = vadd.f32 %v1735, %v1826
    %v1839 = vadd.f32 %v1736, %v1790
    %v1840 = vadd.f32 %v1737, %v1809
    %v1841 = vadd.f32 %v1738, %v1828
    %v1842 = vld [vmem:[%s749] sm:$0xf]
    %v1843 = vld [vmem:[%s749 + $0x4] sm:$0xf]
    %v1844 = vld [vmem:[%s749 + $0x8] sm:$0xf]
    %v1845 = vld [vmem:[%s749 + $0xc] sm:$0xf]
    %v1850 = vunpack.c.l.b16 %v1842
    %v1851 = vunpack.c.l.b16 %v1843
    %v1852 = vunpack.c.l.b16 %v1844
    %v1853 = vunpack.c.l.b16 %v1845
    %v1854 = vpack.c.b16 %v1851, %v1850
    %v1855 = vpack.c.b16 %v1853, %v1852
    %1856 = vrot.lane.b32.xlu0 %v1170, 91
    %v1857 = vpop.permute.xlu0 %1856
    %1858 = vrot.lane.b32.xlu0 %v1171, 91
    %v1859 = vpop.permute.xlu0 %1858
    %1860 = vrot.lane.b32.xlu0 %v1172, 91
    %v1861 = vpop.permute.xlu0 %1860
    %1862 = vrot.lane.b32.xlu0 %v1173, 91
    %v1863 = vpop.permute.xlu0 %1862
    %v1864 = vsel %vm772, %v1857, %v1859
    %v1865 = vsel %vm772, %v1859, %v1861
    %v1866 = vsel %vm772, %v1861, %v1863
    %v1871 = vsel %vm84, %v1854, 0
    %v1874 = vsel %vm84, %v1855, 0
    %1876 = vmatpush.bf16.msra.mxu0 0
    %1877 = vmatpush.bf16.msra.mxu0 0
    %1878 = vmatpush.bf16.msra.mxu0 0
    %1879 = vmatpush.bf16.msra.mxu0 0
    %1880 = vmatpush.bf16.msra.mxu0 0
    %1881 = vmatpush.bf16.msra.mxu0 0
    %1882 = vmatpush.bf16.msra.mxu0 0
    %1883 = vmatpush.bf16.msra.mxu0 %v1864
    %1884 = vmatmul.bf16.gmra.mxu0 %v1871
    %v1885 = vpop.f32.mrf.mxu0
    %v1886 = vadd.f32 0.0, %v1885
    %v1887 = vpop.f32.mrf.mxu0
    %v1888 = vadd.f32 0.0, %v1887
    %1889 = vmatmul.bf16.gmra.mxu0 %v1874
    %v1890 = vpop.f32.mrf.mxu0
    %v1891 = vadd.f32 0.0, %v1890
    %v1892 = vpop.f32.mrf.mxu0
    %v1893 = vadd.f32 0.0, %v1892
    %1894 = vdwg.mxu0
    %1895 = vmatpush.bf16.msra.mxu0 0
    %1896 = vmatpush.bf16.msra.mxu0 0
    %1897 = vmatpush.bf16.msra.mxu0 0
    %1898 = vmatpush.bf16.msra.mxu0 0
    %1899 = vmatpush.bf16.msra.mxu0 0
    %1900 = vmatpush.bf16.msra.mxu0 0
    %1901 = vmatpush.bf16.msra.mxu0 0
    %1902 = vmatpush.bf16.msra.mxu0 %v1865
    %1903 = vmatmul.bf16.gmra.mxu0 %v1871
    %v1904 = vpop.f32.mrf.mxu0
    %v1905 = vadd.f32 0.0, %v1904
    %v1906 = vpop.f32.mrf.mxu0
    %v1907 = vadd.f32 0.0, %v1906
    %1908 = vmatmul.bf16.gmra.mxu0 %v1874
    %v1909 = vpop.f32.mrf.mxu0
    %v1910 = vadd.f32 0.0, %v1909
    %v1911 = vpop.f32.mrf.mxu0
    %v1912 = vadd.f32 0.0, %v1911
    %1913 = vdwg.mxu0
    %1914 = vmatpush.bf16.msra.mxu0 0
    %1915 = vmatpush.bf16.msra.mxu0 0
    %1916 = vmatpush.bf16.msra.mxu0 0
    %1917 = vmatpush.bf16.msra.mxu0 0
    %1918 = vmatpush.bf16.msra.mxu0 0
    %1919 = vmatpush.bf16.msra.mxu0 0
    %1920 = vmatpush.bf16.msra.mxu0 0
    %1921 = vmatpush.bf16.msra.mxu0 %v1866
    %1922 = vmatmul.bf16.gmra.mxu0 %v1871
    %v1923 = vpop.f32.mrf.mxu0
    %v1924 = vadd.f32 0.0, %v1923
    %v1925 = vpop.f32.mrf.mxu0
    %v1926 = vadd.f32 0.0, %v1925
    %1927 = vmatmul.bf16.gmra.mxu0 %v1874
    %v1928 = vpop.f32.mrf.mxu0
    %v1929 = vadd.f32 0.0, %v1928
    %v1930 = vpop.f32.mrf.mxu0
    %v1931 = vadd.f32 0.0, %v1930
    %1932 = vdwg.mxu0
    %v1933 = vadd.f32 %v1830, %v1886
    %v1934 = vadd.f32 %v1831, %v1905
    %v1935 = vadd.f32 %v1832, %v1924
    %v1936 = vadd.f32 %v1833, %v1888
    %v1937 = vadd.f32 %v1834, %v1907
    %v1938 = vadd.f32 %v1835, %v1926
    %v1939 = vadd.f32 %v1836, %v1891
    %v1940 = vadd.f32 %v1837, %v1910
    %v1941 = vadd.f32 %v1838, %v1929
    %v1942 = vadd.f32 %v1839, %v1893
    %v1943 = vadd.f32 %v1840, %v1912
    %v1944 = vadd.f32 %v1841, %v1931
    %v1945 = vld [vmem:[%s854] sm:$0xf]
    %v1946 = vld [vmem:[%s854 + $0x4] sm:$0xf]
    %v1947 = vld [vmem:[%s854 + $0x8] sm:$0xf]
    %v1948 = vld [vmem:[%s854 + $0xc] sm:$0xf]
    %v1953 = vunpack.c.l.b16 %v1945
    %v1954 = vunpack.c.l.b16 %v1946
    %v1955 = vunpack.c.l.b16 %v1947
    %v1956 = vunpack.c.l.b16 %v1948
    %v1957 = vpack.c.b16 %v1954, %v1953
    %v1958 = vpack.c.b16 %v1956, %v1955
    %1959 = vrot.lane.b32.xlu0 %v1170, 90
    %v1960 = vpop.permute.xlu0 %1959
    %1961 = vrot.lane.b32.xlu0 %v1171, 90
    %v1962 = vpop.permute.xlu0 %1961
    %1963 = vrot.lane.b32.xlu0 %v1172, 90
    %v1964 = vpop.permute.xlu0 %1963
    %1965 = vrot.lane.b32.xlu0 %v1173, 90
    %v1966 = vpop.permute.xlu0 %1965
    %v1967 = vsel %vm877, %v1960, %v1962
    %v1968 = vsel %vm877, %v1962, %v1964
    %v1969 = vsel %vm877, %v1964, %v1966
    %v1974 = vsel %vm84, %v1957, 0
    %v1977 = vsel %vm84, %v1958, 0
    %1979 = vmatpush.bf16.msra.mxu0 0
    %1980 = vmatpush.bf16.msra.mxu0 0
    %1981 = vmatpush.bf16.msra.mxu0 0
    %1982 = vmatpush.bf16.msra.mxu0 0
    %1983 = vmatpush.bf16.msra.mxu0 0
    %1984 = vmatpush.bf16.msra.mxu0 0
    %1985 = vmatpush.bf16.msra.mxu0 0
    %1986 = vmatpush.bf16.msra.mxu0 %v1967
    %1987 = vmatmul.bf16.gmra.mxu0 %v1974
    %v1988 = vpop.f32.mrf.mxu0
    %v1989 = vadd.f32 0.0, %v1988
    %v1990 = vpop.f32.mrf.mxu0
    %v1991 = vadd.f32 0.0, %v1990
    %1992 = vmatmul.bf16.gmra.mxu0 %v1977
    %v1993 = vpop.f32.mrf.mxu0
    %v1994 = vadd.f32 0.0, %v1993
    %v1995 = vpop.f32.mrf.mxu0
    %v1996 = vadd.f32 0.0, %v1995
    %1997 = vdwg.mxu0
    %1998 = vmatpush.bf16.msra.mxu0 0
    %1999 = vmatpush.bf16.msra.mxu0 0
    %2000 = vmatpush.bf16.msra.mxu0 0
    %2001 = vmatpush.bf16.msra.mxu0 0
    %2002 = vmatpush.bf16.msra.mxu0 0
    %2003 = vmatpush.bf16.msra.mxu0 0
    %2004 = vmatpush.bf16.msra.mxu0 0
    %2005 = vmatpush.bf16.msra.mxu0 %v1968
    %2006 = vmatmul.bf16.gmra.mxu0 %v1974
    %v2007 = vpop.f32.mrf.mxu0
    %v2008 = vadd.f32 0.0, %v2007
    %v2009 = vpop.f32.mrf.mxu0
    %v2010 = vadd.f32 0.0, %v2009
    %2011 = vmatmul.bf16.gmra.mxu0 %v1977
    %v2012 = vpop.f32.mrf.mxu0
    %v2013 = vadd.f32 0.0, %v2012
    %v2014 = vpop.f32.mrf.mxu0
    %v2015 = vadd.f32 0.0, %v2014
    %2016 = vdwg.mxu0
    %2017 = vmatpush.bf16.msra.mxu0 0
    %2018 = vmatpush.bf16.msra.mxu0 0
    %2019 = vmatpush.bf16.msra.mxu0 0
    %2020 = vmatpush.bf16.msra.mxu0 0
    %2021 = vmatpush.bf16.msra.mxu0 0
    %2022 = vmatpush.bf16.msra.mxu0 0
    %2023 = vmatpush.bf16.msra.mxu0 0
    %2024 = vmatpush.bf16.msra.mxu0 %v1969
    %2025 = vmatmul.bf16.gmra.mxu0 %v1974
    %v2026 = vpop.f32.mrf.mxu0
    %v2027 = vadd.f32 0.0, %v2026
    %v2028 = vpop.f32.mrf.mxu0
    %v2029 = vadd.f32 0.0, %v2028
    %2030 = vmatmul.bf16.gmra.mxu0 %v1977
    %v2031 = vpop.f32.mrf.mxu0
    %v2032 = vadd.f32 0.0, %v2031
    %v2033 = vpop.f32.mrf.mxu0
    %v2034 = vadd.f32 0.0, %v2033
    %2035 = vdwg.mxu0
    %v2036 = vadd.f32 %v1933, %v1989
    %v2037 = vadd.f32 %v1934, %v2008
    %v2038 = vadd.f32 %v1935, %v2027
    %v2039 = vadd.f32 %v1936, %v1991
    %v2040 = vadd.f32 %v1937, %v2010
    %v2041 = vadd.f32 %v1938, %v2029
    %v2042 = vadd.f32 %v1939, %v1994
    %v2043 = vadd.f32 %v1940, %v2013
    %v2044 = vadd.f32 %v1941, %v2032
    %v2045 = vadd.f32 %v1942, %v1996
    %v2046 = vadd.f32 %v1943, %v2015
    %v2047 = vadd.f32 %v1944, %v2034
    %v2048 = vld [vmem:[%s2] sm:$0xff]
    %v2049 = vld [vmem:[%s2 + $0x8] sm:$0xff]
    %v2050 = vld [vmem:[%s2 + $0x10] sm:$0xff]
    %v2051 = vld [vmem:[%s2 + $0x18] sm:$0xff]
    %2053 = vset.pattern.permute.xlu0 0
    %2054 = vperm.xlu0 %2053, %v2048
    %v2055 = vpop.permute.xlu0 %2054
    %2058 = vset.pattern.permute.xlu0 0
    %2059 = vperm.xlu0 %2058, %v2049
    %v2060 = vpop.permute.xlu0 %2059
    %2063 = vset.pattern.permute.xlu0 0
    %2064 = vperm.xlu0 %2063, %v2050
    %v2065 = vpop.permute.xlu0 %2064
    %2068 = vset.pattern.permute.xlu0 0
    %2069 = vperm.xlu0 %2068, %v2051
    %v2070 = vpop.permute.xlu0 %2069
    %v2072 = vadd.f32 %v2036, %v2055
    %v2073 = vadd.f32 %v2037, %v2055
    %v2074 = vadd.f32 %v2038, %v2055
    %v2075 = vadd.f32 %v2039, %v2060
    %v2076 = vadd.f32 %v2040, %v2060
    %v2077 = vadd.f32 %v2041, %v2060
    %v2078 = vadd.f32 %v2042, %v2065
    %v2079 = vadd.f32 %v2043, %v2065
    %v2080 = vadd.f32 %v2044, %v2065
    %v2081 = vadd.f32 %v2045, %v2070
    %v2082 = vadd.f32 %v2046, %v2070
    %v2083 = vadd.f32 %v2047, %v2070
    %v2084 = vmax.f32 %v2072, 0.0
    %v2085 = vmax.f32 %v2073, 0.0
    %v2086 = vmax.f32 %v2074, 0.0
    %v2087 = vmax.f32 %v2075, 0.0
    %v2088 = vmax.f32 %v2076, 0.0
    %v2089 = vmax.f32 %v2077, 0.0
    %v2090 = vmax.f32 %v2078, 0.0
    %v2091 = vmax.f32 %v2079, 0.0
    %v2092 = vmax.f32 %v2080, 0.0
    %v2093 = vmax.f32 %v2081, 0.0
    %v2094 = vmax.f32 %v2082, 0.0
    %v2095 = vmax.f32 %v2083, 0.0
    %v2096 = vpack.c.bf16 %v2087, %v2084
    %v2097 = vpack.c.bf16 %v2088, %v2085
    %v2098 = vpack.c.bf16 %v2089, %v2086
    %v2099 = vpack.c.bf16 %v2093, %v2090
    %v2100 = vpack.c.bf16 %v2094, %v2091
    %v2101 = vpack.c.bf16 %v2095, %v2092
    %v2102 = vld [vmem:[%s3] sm:$0xf]
    %v2103 = vld [vmem:[%s3 + $0x4] sm:$0xf]
    %v2104 = vld [vmem:[%s4] sm:$0xff]
    %v2105 = vld [vmem:[%s4 + $0x8] sm:$0xff]
    %2107 = vset.pattern.permute.xlu0 0
    %2108 = vperm.xlu0 %2107, %v2104
    %v2109 = vpop.permute.xlu0 %2108
    %2112 = vset.pattern.permute.xlu0 0
    %2113 = vperm.xlu0 %2112, %v2105
    %v2114 = vpop.permute.xlu0 %2113
    %v2118 = vunpack.c.l.b16 %v2102
    %v2119 = vunpack.c.l.b16 %v2103
    %v2120 = vpack.c.b16 %v2119, %v2118
    %v2122 = vsel %vm1032, %v2120, 0
    %2124 = vmatpush.bf16.msra.mxu0 0
    %2125 = vmatpush.bf16.msra.mxu0 0
    %2126 = vmatpush.bf16.msra.mxu0 0
    %2127 = vmatpush.bf16.msra.mxu0 0
    %2128 = vmatpush.bf16.msra.mxu0 0
    %2129 = vmatpush.bf16.msra.mxu0 0
    %2130 = vmatpush.bf16.msra.mxu0 %v2099
    %2131 = vmatpush.bf16.msra.mxu0 %v2096
    %2132 = vmatmul.bf16.gmra.mxu0 %v2122
    %v2133 = vpop.f32.mrf.mxu0
    %v2134 = vadd.f32 %v2109, %v2133
    %v2135 = vpop.f32.mrf.mxu0
    %v2136 = vadd.f32 %v2114, %v2135
    %2137 = vdwg.mxu0
    %2138 = vmatpush.bf16.msra.mxu0 0
    %2139 = vmatpush.bf16.msra.mxu0 0
    %2140 = vmatpush.bf16.msra.mxu0 0
    %2141 = vmatpush.bf16.msra.mxu0 0
    %2142 = vmatpush.bf16.msra.mxu0 0
    %2143 = vmatpush.bf16.msra.mxu0 0
    %2144 = vmatpush.bf16.msra.mxu0 %v2100
    %2145 = vmatpush.bf16.msra.mxu0 %v2097
    %2146 = vmatmul.bf16.gmra.mxu0 %v2122
    %v2147 = vpop.f32.mrf.mxu0
    %v2148 = vadd.f32 %v2109, %v2147
    %v2149 = vpop.f32.mrf.mxu0
    %v2150 = vadd.f32 %v2114, %v2149
    %2151 = vdwg.mxu0
    %2152 = vmatpush.bf16.msra.mxu0 0
    %2153 = vmatpush.bf16.msra.mxu0 0
    %2154 = vmatpush.bf16.msra.mxu0 0
    %2155 = vmatpush.bf16.msra.mxu0 0
    %2156 = vmatpush.bf16.msra.mxu0 0
    %2157 = vmatpush.bf16.msra.mxu0 0
    %2158 = vmatpush.bf16.msra.mxu0 %v2101
    %2159 = vmatpush.bf16.msra.mxu0 %v2098
    %2160 = vmatmul.bf16.gmra.mxu0 %v2122
    %v2161 = vpop.f32.mrf.mxu0
    %v2162 = vadd.f32 %v2109, %v2161
    %v2163 = vpop.f32.mrf.mxu0
    %v2164 = vadd.f32 %v2114, %v2163
    %2165 = vdwg.mxu0
    %2174 = vrot.lane.b32.xlu0 %v1128, 109
    %v2175 = vpop.permute.xlu0 %2174
    %2176 = vrot.lane.b32.xlu0 %v1129, 109
    %v2177 = vpop.permute.xlu0 %2176
    %2178 = vrot.lane.b32.xlu0 %v1130, 109
    %v2179 = vpop.permute.xlu0 %2178
    %2180 = vrot.lane.b32.xlu0 %v1131, 109
    %v2181 = vpop.permute.xlu0 %2180
    %2182 = vrot.lane.b32.xlu0 %v1132, 109
    %v2183 = vpop.permute.xlu0 %2182
    %2184 = vrot.lane.b32.xlu0 %v1133, 109
    %v2185 = vpop.permute.xlu0 %2184
    %2186 = vrot.lane.b32.xlu0 %v1134, 109
    %v2187 = vpop.permute.xlu0 %2186
    %2188 = vrot.lane.b32.xlu0 %v1135, 109
    %v2189 = vpop.permute.xlu0 %2188
    %v2190 = vsel %vm1102, %v2175, %v2177
    %v2191 = vsel %vm1102, %v2177, %v2179
    %v2192 = vsel %vm1102, %v2179, %v2181
    %v2193 = vsel %vm1102, %v2183, %v2185
    %v2194 = vsel %vm1102, %v2185, %v2187
    %v2195 = vsel %vm1102, %v2187, %v2189
    %v2202 = vadd.f32 %v2134, %v2190
    %v2203 = vadd.f32 %v2148, %v2191
    %v2204 = vadd.f32 %v2162, %v2192
    %v2205 = vadd.f32 %v2136, %v2193
    %v2206 = vadd.f32 %v2150, %v2194
    %v2207 = vadd.f32 %v2164, %v2195
    %s2208 = scalar_lea.vmem [#allocation2], 48
    %2209 = vst [vmem:[%s2208] sm:$0xff] %v2202
    %2210 = vst [vmem:[%s2208 + $0x8] sm:$0xff] %v2203
    %2211 = vst [vmem:[%s2208 + $0x10] sm:$0xff] %v2204
    %2212 = vst [vmem:[%s2208 + $0x18] sm:$0xff] %v2205
    %2213 = vst [vmem:[%s2208 + $0x20] sm:$0xff] %v2206
    %2214 = vst [vmem:[%s2208 + $0x28] sm:$0xff] %v2207
    // Predicated region
    $region22: #{tpu_custom_call.1} parent=1 // pred_check
      _
    $region23: #{tpu_custom_call.1} parent=1 // pred_check_branch
      %2216 = sbr.rel (0) target = $region25
    $region24: #{tpu_custom_call.1} parent=1 // pred_region
      %2218 = vsyncadd [#allocation3], 0
      %s2219 = sshll.u32 [#allocation2], 4
      %s2220 = int_to_ptr.vmem [resolvable:$true] %s2219
      %s2221 = sshll.u32 %s5, 4
      %s2222 = int_to_ptr.hbm [resolvable:$true] %s2221
      %2227 = dma.vmem_to_hbm [thread:$0]  %s2220, 1536, %s2222, [#allocation3], 384, 384, 24
    $region25: #{tpu_custom_call.1} parent=1 // pred_fallthru
      _
    // Predicated region
    $region26: #{tpu_custom_call.1} parent=1 // pred_check
      _
    $region27: #{tpu_custom_call.1} parent=1 // pred_check_branch
      %2229 = sbr.rel (0) target = $region29
    $region28: #{tpu_custom_call.1} parent=1 // pred_region
      %2231 = dma.done [#allocation3], 1536
    $region29: #{tpu_custom_call.1} parent=1 // pred_fallthru
      _
    %2232 = vsyncpa [#allocation3], 1

</llo_original>
